<compile_context>
chip_gen: v7x
topology: tpu7x:2x2x1
jax: 0.10.0
libtpu: 0.0.40
codegen_flags: <defaults>
</compile_context>

<pallas_src>
import functools
import math

import jax
import jax.numpy as jnp
from jax.experimental import pallas as pl
from jax.experimental.pallas import tpu as pltpu


def _spectral_transform_kernel(x_ref, w1_ref, wfu_ref, wlfu_ref, w2_ref, sh_ref,
                               o_ref, x1_buf, *, c4, qlen):
    """One grid step = `gb` images; lane axis is quadrant-blocked [TL | BL | TR | BR].

    x_ref  : (1, Cin, 4*qlen)  bf16   quadrant-blocked input slab
    w*_ref : bf16 weights (inference-mode BN scale folded in)   -- MXU operands
    sh_ref : (C2, 3) f32 BN shifts, columns = [conv1, fu, lfu]
    o_ref  : (1, Cout, 4*qlen) f32
    x1_buf : (C2, 4*qlen) f32 VMEM scratch streaming x1 between the two passes
    """
    x = x_ref[0]                                           # (Cin, 4*qlen) bf16
    b1, bfu, blfu = sh_ref[:, 0:1], sh_ref[:, 1:2], sh_ref[:, 2:3]

    # ---- Pass A: conv1 + folded-BN shift + ReLU, streamed per quadrant block. ----
    for q in range(4):
        lo, hi = q * qlen, (q + 1) * qlen
        x1q = jnp.dot(w1_ref[...], x[:, lo:hi],
                      preferred_element_type=jnp.float32) + b1
        x1_buf[:, lo:hi] = jnp.maximum(x1q, 0.0)

    # ---- LFU branch: channel-stack the 4 quadrant blocks of x1[:c4] (static,
    # sublane/lane-aligned slices), conv+BN+ReLU, then conv2 of the (would-be
    # repeated) term ONCE over qlen lanes.  conv2(repeat(lfu,2,2)) == tile(conv2(lfu))
    # since conv2 is 1x1, so y_lfu is simply re-added to every output quadrant below
    # instead of materializing the repeated (C2, 4*qlen) tensor.
    lfu_in = jnp.concatenate(
        [x1_buf[:c4, q * qlen:(q + 1) * qlen] for q in range(4)], axis=0)  # (C2, qlen)
    lfu = jnp.maximum(
        jnp.dot(wlfu_ref[...], lfu_in.astype(jnp.bfloat16),
                preferred_element_type=jnp.float32) + blfu, 0.0)
    y_lfu = jnp.dot(w2_ref[...], lfu.astype(jnp.bfloat16),
                    preferred_element_type=jnp.float32)                    # (Cout, qlen)

    # ---- Pass B: FourierUnit conv (+BN, ReLU; the provided spec applies no FFT),
    # x1 + fu, conv2, and the broadcast +y_lfu — per quadrant block, fusing the add
    # into the (lane-dense, 128-aligned) output store.
    for q in range(4):
        lo, hi = q * qlen, (q + 1) * qlen
        x1q = x1_buf[:, lo:hi]                                             # (C2, qlen) f32
        fuq = jnp.maximum(
            jnp.dot(wfu_ref[...], x1q.astype(jnp.bfloat16),
                    preferred_element_type=jnp.float32) + bfu, 0.0)
        accq = (x1q + fuq).astype(jnp.bfloat16)
        yq = jnp.dot(w2_ref[...], accq, preferred_element_type=jnp.float32) + y_lfu
        o_ref[0, :, lo:hi] = yq.astype(o_ref.dtype)


def spectral_transform(x, params, *, batch_per_step=None):
    """x: (B, Cin, H, W) float32 NCHW. Returns (B, Cout, H, W) float32."""
    (w1, s1, b1, wfu, sfu, bfu, wlfu, slfu, blfu, wconv2) = params
    batch, c_in, h, w = x.shape
    c2 = w1.shape[0]
    c_out = wconv2.shape[0]

    # The torch LFU uses split_s = h // 2 for BOTH spatial splits -> square maps only.
    assert h == w and h % 2 == 0, "square, even spatial extent required"
    assert c2 % 4 == 0
    c4 = c2 // 4
    hh = h // 2
    n2 = hh * hh
    # Alignment guards: in-kernel quadrant slices/concat are only free if they stay on
    # (8, 128) f32 tile boundaries.
    assert c4 % 8 == 0, "out_channels//8 must be a multiple of 8 (f32 sublane tile)"
    assert n2 % 128 == 0, "(H/2)*(W/2) must be a multiple of 128 lanes"

    # Grid: batch folded into the lane axis.  Default keeps >=2 parallel steps when
    # batch allows (v7x dual TensorCores); set batch_per_step=batch on 1-TC chips for
    # a single maximally wide step.
    if batch_per_step is None:
        batch_per_step = batch // 2 if (batch % 2 == 0 and batch >= 2) else batch
    assert batch % batch_per_step == 0
    gb = batch_per_step
    steps = batch // gb
    qlen = gb * n2          # lanes per quadrant block per grid step
    lane = 4 * qlen         # total lane extent per grid step

    # Fold inference-mode BN scale into the bias-free conv weights; bf16 MXU operands.
    # The three BN shifts ride in ONE (C2, 3) f32 block (single tiny DMA).
    bf = jnp.bfloat16
    w1f = (w1 * s1[:, None]).astype(bf)
    wfuf = (wfu * sfu[:, None]).astype(bf)
    wlfuf = (wlfu * slfu[:, None]).astype(bf)
    w2f = wconv2.astype(bf)
    shifts = jnp.stack([b1, bfu, blfu], axis=1).astype(jnp.float32)        # (C2, 3)

    # Quadrant-blocked, batch-folded lane layout.  Quadrant block order [TL|BL|TR|BR]
    # matches torch.split(dim=-2)->cat->split(dim=-1)->cat channel ordering; within a
    # quadrant block, lanes are (batch-in-step, i, j).
    # TODO(synk): this pre-transpose and the inverse below are extra HBM round trips in
    # separate XLA ops; fuse into neighbouring ops if they show up in profiles.
    xq = x.reshape(steps, gb, c_in, 2, hh, 2, hh)          # (s, b, c, qh, i, qw, j)
    xq = jnp.transpose(xq, (0, 2, 5, 3, 1, 4, 6))          # (s, c, qw, qh, b, i, j)
    xq = xq.reshape(steps, c_in, lane).astype(bf)

    kernel = functools.partial(_spectral_transform_kernel, c4=c4, qlen=qlen)
    wspec = lambda s: (0, 0)        # weights / shifts: whole array, VMEM-resident

    out = pl.pallas_call(
        kernel,
        out_shape=jax.ShapeDtypeStruct((steps, c_out, lane), jnp.float32),
        grid_spec=pltpu.PrefetchScalarGridSpec(
            num_scalar_prefetch=0,
            grid=(steps,),
            in_specs=[
                pl.BlockSpec((1, c_in, lane), lambda s: (s, 0, 0)),   # input slab (bf16)
                pl.BlockSpec((c2, c_in), wspec),                      # conv1 weight (BN-folded)
                pl.BlockSpec((c2, c2), wspec),                        # fu conv weight
                pl.BlockSpec((c2, c2), wspec),                        # lfu conv weight
                pl.BlockSpec((c_out, c2), wspec),                     # conv2 weight
                pl.BlockSpec((c2, 3), wspec),                         # stacked BN shifts
            ],
            out_specs=pl.BlockSpec((1, c_out, lane), lambda s: (s, 0, 0)),
            scratch_shapes=[pltpu.VMEM((c2, lane), jnp.float32)],     # x1 stream buffer
        ),
        compiler_params=pltpu.CompilerParams(dimension_semantics=("parallel",)),
    )(xq, w1f, wfuf, wlfuf, w2f, shifts)

    # Undo the quadrant-blocked layout back to NCHW.
    out = out.reshape(steps, c_out, 2, 2, gb, hh, hh)      # (s, co, qw, qh, b, i, j)
    out = jnp.transpose(out, (0, 4, 1, 3, 5, 2, 6))        # (s, b, co, qh, i, qw, j)
    return out.reshape(batch, c_out, h, w)


def _reference(x, params):
    """Pure-JAX NCHW reference mirroring the PyTorch forward (inference-mode BN),
    with bf16 matmul operands / f32 accumulation to match the kernel's MXU numerics."""
    (w1, s1, b1, wfu, sfu, bfu, wlfu, slfu, blfu, wconv2) = params
    bf = jnp.bfloat16

    def conv1x1(z, wgt):
        return jnp.einsum('oc,bchw->bohw', wgt.astype(bf), z.astype(bf),
                          preferred_element_type=jnp.float32)

    def conv_bn_relu(z, wgt, sc, sh):
        y = conv1x1(z, wgt * sc[:, None]) + sh[None, :, None, None]
        return jnp.maximum(y, 0.0)

    x1 = conv_bn_relu(x, w1, s1, b1)                        # conv1
    fu = conv_bn_relu(x1, wfu, sfu, bfu)                    # FourierUnit (no FFT in spec)

    c = x1.shape[1]
    c4 = c // 4
    xs = x1[:, :c4]
    xs = jnp.concatenate(jnp.split(xs, 2, axis=2), axis=1)  # split H, cat channels
    xs = jnp.concatenate(jnp.split(xs, 2, axis=3), axis=1)  # split W, cat channels
    xs = conv_bn_relu(xs, wlfu, slfu, blfu)                 # LFU
    xs = jnp.tile(xs, (1, 1, 2, 2))                         # repeat(1,1,2,2)

    # conv2 is linear: conv2(x1+fu+xs) == conv2(x1+fu) + conv2(xs).  Split to match the
    # kernel's bf16 rounding points (exact-arithmetic equivalent to the module).
    return conv1x1(x1 + fu, wconv2) + conv1x1(xs, wconv2)


if __name__ == "__main__":
    # out_channels // 8 channels feed the LFU, so OUT_CHANNELS = 64 -> C2 = 32, c4 = 8
    # (f32 sublane aligned); H = W = 32 gives a lane-aligned quadrant block n2 = 256.
    B = 2
    IN_CHANNELS = 16
    OUT_CHANNELS = 64
    H = W = 32

    C2 = OUT_CHANNELS // 2

    key0 = jax.random.PRNGKey(0)
    ks = jax.random.split(key0, 20)

    def conv_w(k, out_c, in_c):
        bound = 1.0 / math.sqrt(in_c)
        return jax.random.uniform(k, (out_c, in_c), jnp.float32, -bound, bound)

    def bn_fold(kg, kb, km, kv, c, eps=1e-5):
        gamma = jax.random.uniform(kg, (c,), jnp.float32, 0.5, 1.5)
        beta = jax.random.uniform(kb, (c,), jnp.float32, -0.5, 0.5)
        mean = jax.random.uniform(km, (c,), jnp.float32, -0.5, 0.5)
        var = jax.random.uniform(kv, (c,), jnp.float32, 0.5, 1.5)
        scale = gamma / jnp.sqrt(var + eps)
        shift = beta - mean * scale
        return scale, shift

    w1 = conv_w(ks[0], C2, IN_CHANNELS)                    # conv1 (bias=False)
    s1, b1 = bn_fold(ks[1], ks[2], ks[3], ks[4], C2)       # BN of conv1
    wfu = conv_w(ks[5], C2, C2)                            # FourierUnit conv (bias=False)
    sfu, bfu = bn_fold(ks[6], ks[7], ks[8], ks[9], C2)     # BN of fu
    wlfu = conv_w(ks[10], C2, C2)                          # LFU conv (bias=False)
    slfu, blfu = bn_fold(ks[11], ks[12], ks[13], ks[14], C2)
    wconv2 = conv_w(ks[15], OUT_CHANNELS, C2)              # conv2 (bias=False)

    params = (w1, s1, b1, wfu, sfu, bfu, wlfu, slfu, blfu, wconv2)

    x = jax.random.normal(ks[16], (B, IN_CHANNELS, H, W), jnp.float32)

    out = spectral_transform(x, params)
    out = jax.block_until_ready(out)

    ref = _reference(x, params)
    assert out.shape == (B, OUT_CHANNELS, H, W), out.shape
    max_err = float(jnp.max(jnp.abs(out - ref)))
    assert jnp.allclose(out, ref, atol=1e-3, rtol=1e-3), max_err

    print("KERNEL_OK")
</pallas_src>

<mosaic_0001>
module attributes {stable_mosaic.version = 11 : i64} {
  func.func @_spectral_transform_kernel(%arg0: i32, %arg1: memref<1x16x1024xbf16, #tpu.memory_space<vmem>>, %arg2: memref<32x16xbf16, #tpu.memory_space<vmem>>, %arg3: memref<32x32xbf16, #tpu.memory_space<vmem>>, %arg4: memref<32x32xbf16, #tpu.memory_space<vmem>>, %arg5: memref<64x32xbf16, #tpu.memory_space<vmem>>, %arg6: memref<32x3xf32, #tpu.memory_space<vmem>>, %arg7: memref<1x64x1024xf32, #tpu.memory_space<vmem>>, %arg8: memref<32x1024xf32, #tpu.memory_space<vmem>>) attributes {dimension_semantics = [#tpu.dimension_semantics<parallel>], iteration_bounds = array<i64: 2>, scalar_prefetch = 0 : i64, scratch_operands = 1 : i64, tpu.core_type = #tpu.core_type<tc>, window_params = [{transform_indices = @transform_0, window_bounds = array<i64: 1, 16, 1024>}, {pipeline_mode = #tpu.pipeline_mode<synchronous>, transform_indices = @transform_1, window_bounds = array<i64: 32, 16>}, {pipeline_mode = #tpu.pipeline_mode<synchronous>, transform_indices = @transform_2, window_bounds = array<i64: 32, 32>}, {pipeline_mode = #tpu.pipeline_mode<synchronous>, transform_indices = @transform_3, window_bounds = array<i64: 32, 32>}, {pipeline_mode = #tpu.pipeline_mode<synchronous>, transform_indices = @transform_4, window_bounds = array<i64: 64, 32>}, {pipeline_mode = #tpu.pipeline_mode<synchronous>, transform_indices = @transform_5, window_bounds = array<i64: 32, 3>}, {transform_indices = @transform_6, window_bounds = array<i64: 1, 64, 1024>}]} {
    %c0 = arith.constant 0 : index
    %c0_0 = arith.constant 0 : index
    %c0_1 = arith.constant 0 : index
    %0 = vector.load %arg1[%c0, %c0_0, %c0_1] : memref<1x16x1024xbf16, #tpu.memory_space<vmem>>, vector<1x16x1024xbf16>
    %1 = vector.shape_cast %0 : vector<1x16x1024xbf16> to vector<16x1024xbf16>
    %c0_2 = arith.constant 0 : index
    %c0_3 = arith.constant 0 : index
    %2 = vector.load %arg6[%c0_2, %c0_3] : memref<32x3xf32, #tpu.memory_space<vmem>>, vector<32x1xf32>
    %c0_4 = arith.constant 0 : index
    %c1 = arith.constant 1 : index
    %3 = vector.load %arg6[%c0_4, %c1] : memref<32x3xf32, #tpu.memory_space<vmem>>, vector<32x1xf32>
    %c0_5 = arith.constant 0 : index
    %c2 = arith.constant 2 : index
    %4 = vector.load %arg6[%c0_5, %c2] : memref<32x3xf32, #tpu.memory_space<vmem>>, vector<32x1xf32>
    %c0_6 = arith.constant 0 : index
    %c0_7 = arith.constant 0 : index
    %5 = vector.load %arg2[%c0_6, %c0_7] : memref<32x16xbf16, #tpu.memory_space<vmem>>, vector<32x16xbf16>
    %6 = vector.extract_strided_slice %1 {offsets = [0, 0], sizes = [16, 256], strides = [1, 1]} : vector<16x1024xbf16> to vector<16x256xbf16>
    %cst = arith.constant dense<0.000000e+00> : vector<32x256xf32>
    %7 = tpu.matmul %5, %6, %cst {dimension_numbers = #tpu.dot_dimension_numbers<[1], [0], [0], [1], [0, 0, 1, 1], [], []>} : vector<32x16xbf16>, vector<16x256xbf16>, vector<32x256xf32> -> vector<32x256xf32>
    %8 = vector.broadcast %2 : vector<32x1xf32> to vector<32x256xf32>
    %9 = arith.addf %7, %8 : vector<32x256xf32>
    %cst_8 = arith.constant 0.000000e+00 : f32
    %10 = vector.broadcast %cst_8 : f32 to vector<32x256xf32>
    %11 = arith.maximumf %9, %10 : vector<32x256xf32>
    %c0_9 = arith.constant 0 : index
    %c0_10 = arith.constant 0 : index
    %12 = vector.load %arg8[%c0_9, %c0_10] : memref<32x1024xf32, #tpu.memory_space<vmem>>, vector<32x256xf32>
    tpu.vector_store %arg8[%c0_9, %c0_10], %11 {strides = array<i32>} : memref<32x1024xf32, #tpu.memory_space<vmem>>, vector<32x256xf32>,
    %c0_11 = arith.constant 0 : index
    %c0_12 = arith.constant 0 : index
    %13 = vector.load %arg2[%c0_11, %c0_12] : memref<32x16xbf16, #tpu.memory_space<vmem>>, vector<32x16xbf16>
    %14 = vector.extract_strided_slice %1 {offsets = [0, 256], sizes = [16, 256], strides = [1, 1]} : vector<16x1024xbf16> to vector<16x256xbf16>
    %cst_13 = arith.constant dense<0.000000e+00> : vector<32x256xf32>
    %15 = tpu.matmul %13, %14, %cst_13 {dimension_numbers = #tpu.dot_dimension_numbers<[1], [0], [0], [1], [0, 0, 1, 1], [], []>} : vector<32x16xbf16>, vector<16x256xbf16>, vector<32x256xf32> -> vector<32x256xf32>
    %16 = vector.broadcast %2 : vector<32x1xf32> to vector<32x256xf32>
    %17 = arith.addf %15, %16 : vector<32x256xf32>
    %cst_14 = arith.constant 0.000000e+00 : f32
    %18 = vector.broadcast %cst_14 : f32 to vector<32x256xf32>
    %19 = arith.maximumf %17, %18 : vector<32x256xf32>
    %c0_15 = arith.constant 0 : index
    %c256 = arith.constant 256 : index
    %20 = vector.load %arg8[%c0_15, %c256] : memref<32x1024xf32, #tpu.memory_space<vmem>>, vector<32x256xf32>
    tpu.vector_store %arg8[%c0_15, %c256], %19 {strides = array<i32>} : memref<32x1024xf32, #tpu.memory_space<vmem>>, vector<32x256xf32>,
    %c0_16 = arith.constant 0 : index
    %c0_17 = arith.constant 0 : index
    %21 = vector.load %arg2[%c0_16, %c0_17] : memref<32x16xbf16, #tpu.memory_space<vmem>>, vector<32x16xbf16>
    %22 = vector.extract_strided_slice %1 {offsets = [0, 512], sizes = [16, 256], strides = [1, 1]} : vector<16x1024xbf16> to vector<16x256xbf16>
    %cst_18 = arith.constant dense<0.000000e+00> : vector<32x256xf32>
    %23 = tpu.matmul %21, %22, %cst_18 {dimension_numbers = #tpu.dot_dimension_numbers<[1], [0], [0], [1], [0, 0, 1, 1], [], []>} : vector<32x16xbf16>, vector<16x256xbf16>, vector<32x256xf32> -> vector<32x256xf32>
    %24 = vector.broadcast %2 : vector<32x1xf32> to vector<32x256xf32>
    %25 = arith.addf %23, %24 : vector<32x256xf32>
    %cst_19 = arith.constant 0.000000e+00 : f32
    %26 = vector.broadcast %cst_19 : f32 to vector<32x256xf32>
    %27 = arith.maximumf %25, %26 : vector<32x256xf32>
    %c0_20 = arith.constant 0 : index
    %c512 = arith.constant 512 : index
    %28 = vector.load %arg8[%c0_20, %c512] : memref<32x1024xf32, #tpu.memory_space<vmem>>, vector<32x256xf32>
    tpu.vector_store %arg8[%c0_20, %c512], %27 {strides = array<i32>} : memref<32x1024xf32, #tpu.memory_space<vmem>>, vector<32x256xf32>,
    %c0_21 = arith.constant 0 : index
    %c0_22 = arith.constant 0 : index
    %29 = vector.load %arg2[%c0_21, %c0_22] : memref<32x16xbf16, #tpu.memory_space<vmem>>, vector<32x16xbf16>
    %30 = vector.extract_strided_slice %1 {offsets = [0, 768], sizes = [16, 256], strides = [1, 1]} : vector<16x1024xbf16> to vector<16x256xbf16>
    %cst_23 = arith.constant dense<0.000000e+00> : vector<32x256xf32>
    %31 = tpu.matmul %29, %30, %cst_23 {dimension_numbers = #tpu.dot_dimension_numbers<[1], [0], [0], [1], [0, 0, 1, 1], [], []>} : vector<32x16xbf16>, vector<16x256xbf16>, vector<32x256xf32> -> vector<32x256xf32>
    %32 = vector.broadcast %2 : vector<32x1xf32> to vector<32x256xf32>
    %33 = arith.addf %31, %32 : vector<32x256xf32>
    %cst_24 = arith.constant 0.000000e+00 : f32
    %34 = vector.broadcast %cst_24 : f32 to vector<32x256xf32>
    %35 = arith.maximumf %33, %34 : vector<32x256xf32>
    %c0_25 = arith.constant 0 : index
    %c768 = arith.constant 768 : index
    %36 = vector.load %arg8[%c0_25, %c768] : memref<32x1024xf32, #tpu.memory_space<vmem>>, vector<32x256xf32>
    tpu.vector_store %arg8[%c0_25, %c768], %35 {strides = array<i32>} : memref<32x1024xf32, #tpu.memory_space<vmem>>, vector<32x256xf32>,
    %c0_26 = arith.constant 0 : index
    %c0_27 = arith.constant 0 : index
    %37 = vector.load %arg8[%c0_26, %c0_27] : memref<32x1024xf32, #tpu.memory_space<vmem>>, vector<8x256xf32>
    %c0_28 = arith.constant 0 : index
    %c256_29 = arith.constant 256 : index
    %38 = vector.load %arg8[%c0_28, %c256_29] : memref<32x1024xf32, #tpu.memory_space<vmem>>, vector<8x256xf32>
    %c0_30 = arith.constant 0 : index
    %c512_31 = arith.constant 512 : index
    %39 = vector.load %arg8[%c0_30, %c512_31] : memref<32x1024xf32, #tpu.memory_space<vmem>>, vector<8x256xf32>
    %c0_32 = arith.constant 0 : index
    %c768_33 = arith.constant 768 : index
    %40 = vector.load %arg8[%c0_32, %c768_33] : memref<32x1024xf32, #tpu.memory_space<vmem>>, vector<8x256xf32>
    %41 = tpu.concatenate %37, %38, %39, %40 in 0 : vector<8x256xf32>, vector<8x256xf32>, vector<8x256xf32>, vector<8x256xf32> -> vector<32x256xf32>
    %c0_34 = arith.constant 0 : index
    %c0_35 = arith.constant 0 : index
    %42 = vector.load %arg4[%c0_34, %c0_35] : memref<32x32xbf16, #tpu.memory_space<vmem>>, vector<32x32xbf16>
    %43 = arith.truncf %41 : vector<32x256xf32> to vector<32x256xbf16>
    %cst_36 = arith.constant dense<0.000000e+00> : vector<32x256xf32>
    %44 = tpu.matmul %42, %43, %cst_36 {dimension_numbers = #tpu.dot_dimension_numbers<[1], [0], [0], [1], [0, 0, 1, 1], [], []>} : vector<32x32xbf16>, vector<32x256xbf16>, vector<32x256xf32> -> vector<32x256xf32>
    %45 = vector.broadcast %4 : vector<32x1xf32> to vector<32x256xf32>
    %46 = arith.addf %44, %45 : vector<32x256xf32>
    %cst_37 = arith.constant 0.000000e+00 : f32
    %47 = vector.broadcast %cst_37 : f32 to vector<32x256xf32>
    %48 = arith.maximumf %46, %47 : vector<32x256xf32>
    %c0_38 = arith.constant 0 : index
    %c0_39 = arith.constant 0 : index
    %49 = vector.load %arg5[%c0_38, %c0_39] : memref<64x32xbf16, #tpu.memory_space<vmem>>, vector<64x32xbf16>
    %50 = arith.truncf %48 : vector<32x256xf32> to vector<32x256xbf16>
    %cst_40 = arith.constant dense<0.000000e+00> : vector<64x256xf32>
    %51 = tpu.matmul %49, %50, %cst_40 {dimension_numbers = #tpu.dot_dimension_numbers<[1], [0], [0], [1], [0, 0, 1, 1], [], []>} : vector<64x32xbf16>, vector<32x256xbf16>, vector<64x256xf32> -> vector<64x256xf32>
    %c0_41 = arith.constant 0 : index
    %c0_42 = arith.constant 0 : index
    %52 = vector.load %arg8[%c0_41, %c0_42] : memref<32x1024xf32, #tpu.memory_space<vmem>>, vector<32x256xf32>
    %c0_43 = arith.constant 0 : index
    %c0_44 = arith.constant 0 : index
    %53 = vector.load %arg3[%c0_43, %c0_44] : memref<32x32xbf16, #tpu.memory_space<vmem>>, vector<32x32xbf16>
    %54 = arith.truncf %52 : vector<32x256xf32> to vector<32x256xbf16>
    %cst_45 = arith.constant dense<0.000000e+00> : vector<32x256xf32>
    %55 = tpu.matmul %53, %54, %cst_45 {dimension_numbers = #tpu.dot_dimension_numbers<[1], [0], [0], [1], [0, 0, 1, 1], [], []>} : vector<32x32xbf16>, vector<32x256xbf16>, vector<32x256xf32> -> vector<32x256xf32>
    %56 = vector.broadcast %3 : vector<32x1xf32> to vector<32x256xf32>
    %57 = arith.addf %55, %56 : vector<32x256xf32>
    %cst_46 = arith.constant 0.000000e+00 : f32
    %58 = vector.broadcast %cst_46 : f32 to vector<32x256xf32>
    %59 = arith.maximumf %57, %58 : vector<32x256xf32>
    %60 = arith.addf %52, %59 : vector<32x256xf32>
    %61 = arith.truncf %60 : vector<32x256xf32> to vector<32x256xbf16>
    %c0_47 = arith.constant 0 : index
    %c0_48 = arith.constant 0 : index
    %62 = vector.load %arg5[%c0_47, %c0_48] : memref<64x32xbf16, #tpu.memory_space<vmem>>, vector<64x32xbf16>
    %cst_49 = arith.constant dense<0.000000e+00> : vector<64x256xf32>
    %63 = tpu.matmul %62, %61, %cst_49 {dimension_numbers = #tpu.dot_dimension_numbers<[1], [0], [0], [1], [0, 0, 1, 1], [], []>} : vector<64x32xbf16>, vector<32x256xbf16>, vector<64x256xf32> -> vector<64x256xf32>
    %64 = arith.addf %63, %51 : vector<64x256xf32>
    %c0_50 = arith.constant 0 : index
    %c0_51 = arith.constant 0 : index
    %c0_52 = arith.constant 0 : index
    %65 = vector.load %arg7[%c0_50, %c0_51, %c0_52] : memref<1x64x1024xf32, #tpu.memory_space<vmem>>, vector<1x64x256xf32>
    %66 = vector.shape_cast %65 : vector<1x64x256xf32> to vector<64x256xf32>
    %67 = vector.shape_cast %64 : vector<64x256xf32> to vector<1x64x256xf32>
    tpu.vector_store %arg7[%c0_50, %c0_51, %c0_52], %67 {strides = array<i32>} : memref<1x64x1024xf32, #tpu.memory_space<vmem>>, vector<1x64x256xf32>,
    %c0_53 = arith.constant 0 : index
    %c256_54 = arith.constant 256 : index
    %68 = vector.load %arg8[%c0_53, %c256_54] : memref<32x1024xf32, #tpu.memory_space<vmem>>, vector<32x256xf32>
    %c0_55 = arith.constant 0 : index
    %c0_56 = arith.constant 0 : index
    %69 = vector.load %arg3[%c0_55, %c0_56] : memref<32x32xbf16, #tpu.memory_space<vmem>>, vector<32x32xbf16>
    %70 = arith.truncf %68 : vector<32x256xf32> to vector<32x256xbf16>
    %cst_57 = arith.constant dense<0.000000e+00> : vector<32x256xf32>
    %71 = tpu.matmul %69, %70, %cst_57 {dimension_numbers = #tpu.dot_dimension_numbers<[1], [0], [0], [1], [0, 0, 1, 1], [], []>} : vector<32x32xbf16>, vector<32x256xbf16>, vector<32x256xf32> -> vector<32x256xf32>
    %72 = vector.broadcast %3 : vector<32x1xf32> to vector<32x256xf32>
    %73 = arith.addf %71, %72 : vector<32x256xf32>
    %cst_58 = arith.constant 0.000000e+00 : f32
    %74 = vector.broadcast %cst_58 : f32 to vector<32x256xf32>
    %75 = arith.maximumf %73, %74 : vector<32x256xf32>
    %76 = arith.addf %68, %75 : vector<32x256xf32>
    %77 = arith.truncf %76 : vector<32x256xf32> to vector<32x256xbf16>
    %c0_59 = arith.constant 0 : index
    %c0_60 = arith.constant 0 : index
    %78 = vector.load %arg5[%c0_59, %c0_60] : memref<64x32xbf16, #tpu.memory_space<vmem>>, vector<64x32xbf16>
    %cst_61 = arith.constant dense<0.000000e+00> : vector<64x256xf32>
    %79 = tpu.matmul %78, %77, %cst_61 {dimension_numbers = #tpu.dot_dimension_numbers<[1], [0], [0], [1], [0, 0, 1, 1], [], []>} : vector<64x32xbf16>, vector<32x256xbf16>, vector<64x256xf32> -> vector<64x256xf32>
    %80 = arith.addf %79, %51 : vector<64x256xf32>
    %c0_62 = arith.constant 0 : index
    %c0_63 = arith.constant 0 : index
    %c256_64 = arith.constant 256 : index
    %81 = vector.load %arg7[%c0_62, %c0_63, %c256_64] : memref<1x64x1024xf32, #tpu.memory_space<vmem>>, vector<1x64x256xf32>
    %82 = vector.shape_cast %81 : vector<1x64x256xf32> to vector<64x256xf32>
    %83 = vector.shape_cast %80 : vector<64x256xf32> to vector<1x64x256xf32>
    tpu.vector_store %arg7[%c0_62, %c0_63, %c256_64], %83 {strides = array<i32>} : memref<1x64x1024xf32, #tpu.memory_space<vmem>>, vector<1x64x256xf32>,
    %c0_65 = arith.constant 0 : index
    %c512_66 = arith.constant 512 : index
    %84 = vector.load %arg8[%c0_65, %c512_66] : memref<32x1024xf32, #tpu.memory_space<vmem>>, vector<32x256xf32>
    %c0_67 = arith.constant 0 : index
    %c0_68 = arith.constant 0 : index
    %85 = vector.load %arg3[%c0_67, %c0_68] : memref<32x32xbf16, #tpu.memory_space<vmem>>, vector<32x32xbf16>
    %86 = arith.truncf %84 : vector<32x256xf32> to vector<32x256xbf16>
    %cst_69 = arith.constant dense<0.000000e+00> : vector<32x256xf32>
    %87 = tpu.matmul %85, %86, %cst_69 {dimension_numbers = #tpu.dot_dimension_numbers<[1], [0], [0], [1], [0, 0, 1, 1], [], []>} : vector<32x32xbf16>, vector<32x256xbf16>, vector<32x256xf32> -> vector<32x256xf32>
    %88 = vector.broadcast %3 : vector<32x1xf32> to vector<32x256xf32>
    %89 = arith.addf %87, %88 : vector<32x256xf32>
    %cst_70 = arith.constant 0.000000e+00 : f32
    %90 = vector.broadcast %cst_70 : f32 to vector<32x256xf32>
    %91 = arith.maximumf %89, %90 : vector<32x256xf32>
    %92 = arith.addf %84, %91 : vector<32x256xf32>
    %93 = arith.truncf %92 : vector<32x256xf32> to vector<32x256xbf16>
    %c0_71 = arith.constant 0 : index
    %c0_72 = arith.constant 0 : index
    %94 = vector.load %arg5[%c0_71, %c0_72] : memref<64x32xbf16, #tpu.memory_space<vmem>>, vector<64x32xbf16>
    %cst_73 = arith.constant dense<0.000000e+00> : vector<64x256xf32>
    %95 = tpu.matmul %94, %93, %cst_73 {dimension_numbers = #tpu.dot_dimension_numbers<[1], [0], [0], [1], [0, 0, 1, 1], [], []>} : vector<64x32xbf16>, vector<32x256xbf16>, vector<64x256xf32> -> vector<64x256xf32>
    %96 = arith.addf %95, %51 : vector<64x256xf32>
    %c0_74 = arith.constant 0 : index
    %c0_75 = arith.constant 0 : index
    %c512_76 = arith.constant 512 : index
    %97 = vector.load %arg7[%c0_74, %c0_75, %c512_76] : memref<1x64x1024xf32, #tpu.memory_space<vmem>>, vector<1x64x256xf32>
    %98 = vector.shape_cast %97 : vector<1x64x256xf32> to vector<64x256xf32>
    %99 = vector.shape_cast %96 : vector<64x256xf32> to vector<1x64x256xf32>
    tpu.vector_store %arg7[%c0_74, %c0_75, %c512_76], %99 {strides = array<i32>} : memref<1x64x1024xf32, #tpu.memory_space<vmem>>, vector<1x64x256xf32>,
    %c0_77 = arith.constant 0 : index
    %c768_78 = arith.constant 768 : index
    %100 = vector.load %arg8[%c0_77, %c768_78] : memref<32x1024xf32, #tpu.memory_space<vmem>>, vector<32x256xf32>
    %c0_79 = arith.constant 0 : index
    %c0_80 = arith.constant 0 : index
    %101 = vector.load %arg3[%c0_79, %c0_80] : memref<32x32xbf16, #tpu.memory_space<vmem>>, vector<32x32xbf16>
    %102 = arith.truncf %100 : vector<32x256xf32> to vector<32x256xbf16>
    %cst_81 = arith.constant dense<0.000000e+00> : vector<32x256xf32>
    %103 = tpu.matmul %101, %102, %cst_81 {dimension_numbers = #tpu.dot_dimension_numbers<[1], [0], [0], [1], [0, 0, 1, 1], [], []>} : vector<32x32xbf16>, vector<32x256xbf16>, vector<32x256xf32> -> vector<32x256xf32>
    %104 = vector.broadcast %3 : vector<32x1xf32> to vector<32x256xf32>
    %105 = arith.addf %103, %104 : vector<32x256xf32>
    %cst_82 = arith.constant 0.000000e+00 : f32
    %106 = vector.broadcast %cst_82 : f32 to vector<32x256xf32>
    %107 = arith.maximumf %105, %106 : vector<32x256xf32>
    %108 = arith.addf %100, %107 : vector<32x256xf32>
    %109 = arith.truncf %108 : vector<32x256xf32> to vector<32x256xbf16>
    %c0_83 = arith.constant 0 : index
    %c0_84 = arith.constant 0 : index
    %110 = vector.load %arg5[%c0_83, %c0_84] : memref<64x32xbf16, #tpu.memory_space<vmem>>, vector<64x32xbf16>
    %cst_85 = arith.constant dense<0.000000e+00> : vector<64x256xf32>
    %111 = tpu.matmul %110, %109, %cst_85 {dimension_numbers = #tpu.dot_dimension_numbers<[1], [0], [0], [1], [0, 0, 1, 1], [], []>} : vector<64x32xbf16>, vector<32x256xbf16>, vector<64x256xf32> -> vector<64x256xf32>
    %112 = arith.addf %111, %51 : vector<64x256xf32>
    %c0_86 = arith.constant 0 : index
    %c0_87 = arith.constant 0 : index
    %c768_88 = arith.constant 768 : index
    %113 = vector.load %arg7[%c0_86, %c0_87, %c768_88] : memref<1x64x1024xf32, #tpu.memory_space<vmem>>, vector<1x64x256xf32>
    %114 = vector.shape_cast %113 : vector<1x64x256xf32> to vector<64x256xf32>
    %115 = vector.shape_cast %112 : vector<64x256xf32> to vector<1x64x256xf32>
    tpu.vector_store %arg7[%c0_86, %c0_87, %c768_88], %115 {strides = array<i32>} : memref<1x64x1024xf32, #tpu.memory_space<vmem>>, vector<1x64x256xf32>,
    return
  }
  func.func @transform_0(%arg0: i32) -> (i32, i32, i32) {
    %c0_i32 = arith.constant 0 : i32
    %c0_i32_0 = arith.constant 0 : i32
    %c0_i32_1 = arith.constant 0 : i32
    return %arg0, %c0_i32, %c0_i32_0 : i32, i32, i32
  }
  func.func @transform_1(%arg0: i32) -> (i32, i32) {
    %c0_i32 = arith.constant 0 : i32
    %c0_i32_0 = arith.constant 0 : i32
    %c0_i32_1 = arith.constant 0 : i32
    return %c0_i32, %c0_i32_0 : i32, i32
  }
  func.func @transform_2(%arg0: i32) -> (i32, i32) {
    %c0_i32 = arith.constant 0 : i32
    %c0_i32_0 = arith.constant 0 : i32
    %c0_i32_1 = arith.constant 0 : i32
    return %c0_i32, %c0_i32_0 : i32, i32
  }
  func.func @transform_3(%arg0: i32) -> (i32, i32) {
    %c0_i32 = arith.constant 0 : i32
    %c0_i32_0 = arith.constant 0 : i32
    %c0_i32_1 = arith.constant 0 : i32
    return %c0_i32, %c0_i32_0 : i32, i32
  }
  func.func @transform_4(%arg0: i32) -> (i32, i32) {
    %c0_i32 = arith.constant 0 : i32
    %c0_i32_0 = arith.constant 0 : i32
    %c0_i32_1 = arith.constant 0 : i32
    return %c0_i32, %c0_i32_0 : i32, i32
  }
  func.func @transform_5(%arg0: i32) -> (i32, i32) {
    %c0_i32 = arith.constant 0 : i32
    %c0_i32_0 = arith.constant 0 : i32
    %c0_i32_1 = arith.constant 0 : i32
    return %c0_i32, %c0_i32_0 : i32, i32
  }
  func.func @transform_6(%arg0: i32) -> (i32, i32, i32) {
    %c0_i32 = arith.constant 0 : i32
    %c0_i32_0 = arith.constant 0 : i32
    %c0_i32_1 = arith.constant 0 : i32
    return %arg0, %c0_i32, %c0_i32_0 : i32, i32, i32
  }
}

</mosaic_0001>

<llo_original>
// kernel: tpu_custom_call.1
$region0: #{tpu_custom_call.1}
  #allocation0 [shape = 'u32[]', space=smem, size = 0x4, offset = 0x4, fixed_abs, tag = 'smem constant byte address 0x4 - core index']
  #allocation1 [shape = 'u32[144,128]{1,0:T(1,128)}', space=vmem, size = 0x12000, scoped, tag = 'internal scratch']
  #allocation2 [shape = 'f32[32,1024]{1,0:T(8,128)}', space=vmem, size = 0x20000, scoped, tag = 'scratch operand']
  %s0 = inlined_call_operand.hbm [shape: bf16[2,16,1024], index: 0, kind: input, shape index: {}]
  %s1 = inlined_call_operand.vmem [shape: bf16[32,16], index: 1, kind: input, shape index: {}]
  %s2 = inlined_call_operand.vmem [shape: bf16[32,32], index: 2, kind: input, shape index: {}]
  %s3 = inlined_call_operand.vmem [shape: bf16[32,32], index: 3, kind: input, shape index: {}]
  %s4 = inlined_call_operand.vmem [shape: bf16[64,32], index: 4, kind: input, shape index: {}]
  %s5 = inlined_call_operand.vmem [shape: f32[32,3], index: 5, kind: input, shape index: {}]
  %s6 = inlined_call_operand.hbm [shape: f32[2,64,1024], index: 6, kind: output, shape index: {}]
  %s7 = sld [smem:[#allocation0]]
  $region61: #{tpu_custom_call.1} parent=0
    _
  %s9 = ssub.s32 1, %s7
  %s10 = scalar_select 0, %s9, %s7
  $region1: #{tpu_custom_call.1} parent=0
    #allocation3 [shape = 'u8[65536]{0}', space=vmem, size = 0x10000, scoped, tag = 'input window, operand 0']
    #allocation4 [shape = 's32[2]{0}', space=sflag, size = 0x8, scoped, tag = 'scoped memory for tpu_custom_call.1']
    #allocation5 [shape = 's32[2]{0}', space=sflag, size = 0x8, scoped, tag = 'scoped memory for tpu_custom_call.1']
    #allocation6 [shape = 'u8[524288]{0}', space=vmem, size = 0x80000, scoped, tag = 'output window, operand 0']
    %11 = vsyncpa [#allocation4], 0
    %s12 = scalar_lea.sflag [#allocation4], 1
    %13 = vsyncpa %s12, 0
    %14 = vsyncpa [#allocation5], 0
    %s15 = scalar_lea.sflag [#allocation5], 1
    %16 = vsyncpa %s15, 0
    loop: start=0, step=1, limit=4
    $region2: #{tpu_custom_call.1} parent=1 // loop_pre_header
      _
    $region3: #{tpu_custom_call.1} parent=1 // loop_header
      %s18 = sphi 0, %s22
      %p19 = scmp.ge.s32.totalorder %s18, 4
      %s28 = sphi 0, %s30
      %s31 = sphi 0, %s28
      %s32 = sphi 0, %s31
      %s48 = sphi 0, %s32
      %s52 = sphi 0, %s52
      %s54 = sphi 0, %s52
      %s55 = sphi 0, %s54
      %s69 = sphi 0, %s55
      %s73 = sphi 0, %s73
      %s75 = sphi 0, %s73
      %s76 = sphi 0, %s75
      %s90 = sphi 0, %s76
      %s94 = sphi 0, %s94
      %s96 = sphi 0, %s94
      %s97 = sphi 0, %s96
      %s111 = sphi 0, %s97
      %s115 = sphi 0, %s115
      %s117 = sphi 0, %s115
      %s118 = sphi 0, %s117
      %s132 = sphi 0, %s118
      %s136 = sphi 0, %s136
      %s138 = sphi 0, %s136
      %s139 = sphi 0, %s138
      %s153 = sphi 0, %s139
      %s159 = sphi 0, %s161
      %s162 = sphi 0, %s159
      %s163 = sphi 0, %s162
      %s179 = sphi 0, %s163
    $region4: #{tpu_custom_call.1} parent=1 // loop_header_branch
      %21 = sbr.rel (%p19) target = $region8
    $region5: #{tpu_custom_call.1} parent=1 // loop_body
      %s23 = ssub.s32 %s18, 1
      %s24 = ssub.s32 %s18, 2
      %s25 = sadd.s32 %s18, 1
      %s26 = ssub.s32 %s18, %s25
      %p27 = scmp.eq.s32.totalorder %s26, 0
      %s29 = sadd.s32 %s28, 1
      %s30 = scalar_select %p27, %s28, %s29
      %p33 = pneg %p27
      %p34 = scmp.eq.s32.totalorder %s18, 1
      %p35 = por %p33, %p34
      %p36 = scmp.ne.s32.totalorder %s28, %s31
      %p37 = scmp.eq.s32.totalorder %s18, 0
      %p38 = por %p36, %p37
      %p39 = scmp.ne.s32.totalorder %s28, %s31
      %p40 = scmp.eq.s32.totalorder %s23, 1
      %p41 = por %p39, %p40
      %p42 = scmp.ne.s32.totalorder %s31, %s32
      %p43 = scmp.eq.s32.totalorder %s23, 0
      %p44 = por %p42, %p43
      %p45 = scmp.ne.s32.totalorder %s31, %s32
      %p46 = scmp.eq.s32.totalorder %s24, 1
      %p47 = por %p45, %p46
      %p49 = scmp.ne.s32.totalorder %s32, %s48
      %p50 = scmp.eq.s32.totalorder %s24, 0
      %p51 = por %p49, %p50
      %s53 = sadd.s32 %s52, 1
      %p56 = scmp.eq.s32.totalorder %s18, 1
      %p57 = scmp.ne.s32.totalorder %s52, %s54
      %p58 = scmp.eq.s32.totalorder %s18, 0
      %p59 = por %p57, %p58
      %p60 = scmp.ne.s32.totalorder %s52, %s54
      %p61 = scmp.eq.s32.totalorder %s23, 1
      %p62 = por %p60, %p61
      %p63 = scmp.ne.s32.totalorder %s54, %s55
      %p64 = scmp.eq.s32.totalorder %s23, 0
      %p65 = por %p63, %p64
      %p66 = scmp.ne.s32.totalorder %s54, %s55
      %p67 = scmp.eq.s32.totalorder %s24, 1
      %p68 = por %p66, %p67
      %p70 = scmp.ne.s32.totalorder %s55, %s69
      %p71 = scmp.eq.s32.totalorder %s24, 0
      %p72 = por %p70, %p71
      %s74 = sadd.s32 %s73, 1
      %p77 = scmp.eq.s32.totalorder %s18, 1
      %p78 = scmp.ne.s32.totalorder %s73, %s75
      %p79 = scmp.eq.s32.totalorder %s18, 0
      %p80 = por %p78, %p79
      %p81 = scmp.ne.s32.totalorder %s73, %s75
      %p82 = scmp.eq.s32.totalorder %s23, 1
      %p83 = por %p81, %p82
      %p84 = scmp.ne.s32.totalorder %s75, %s76
      %p85 = scmp.eq.s32.totalorder %s23, 0
      %p86 = por %p84, %p85
      %p87 = scmp.ne.s32.totalorder %s75, %s76
      %p88 = scmp.eq.s32.totalorder %s24, 1
      %p89 = por %p87, %p88
      %p91 = scmp.ne.s32.totalorder %s76, %s90
      %p92 = scmp.eq.s32.totalorder %s24, 0
      %p93 = por %p91, %p92
      %s95 = sadd.s32 %s94, 1
      %p98 = scmp.eq.s32.totalorder %s18, 1
      %p99 = scmp.ne.s32.totalorder %s94, %s96
      %p100 = scmp.eq.s32.totalorder %s18, 0
      %p101 = por %p99, %p100
      %p102 = scmp.ne.s32.totalorder %s94, %s96
      %p103 = scmp.eq.s32.totalorder %s23, 1
      %p104 = por %p102, %p103
      %p105 = scmp.ne.s32.totalorder %s96, %s97
      %p106 = scmp.eq.s32.totalorder %s23, 0
      %p107 = por %p105, %p106
      %p108 = scmp.ne.s32.totalorder %s96, %s97
      %p109 = scmp.eq.s32.totalorder %s24, 1
      %p110 = por %p108, %p109
      %p112 = scmp.ne.s32.totalorder %s97, %s111
      %p113 = scmp.eq.s32.totalorder %s24, 0
      %p114 = por %p112, %p113
      %s116 = sadd.s32 %s115, 1
      %p119 = scmp.eq.s32.totalorder %s18, 1
      %p120 = scmp.ne.s32.totalorder %s115, %s117
      %p121 = scmp.eq.s32.totalorder %s18, 0
      %p122 = por %p120, %p121
      %p123 = scmp.ne.s32.totalorder %s115, %s117
      %p124 = scmp.eq.s32.totalorder %s23, 1
      %p125 = por %p123, %p124
      %p126 = scmp.ne.s32.totalorder %s117, %s118
      %p127 = scmp.eq.s32.totalorder %s23, 0
      %p128 = por %p126, %p127
      %p129 = scmp.ne.s32.totalorder %s117, %s118
      %p130 = scmp.eq.s32.totalorder %s24, 1
      %p131 = por %p129, %p130
      %p133 = scmp.ne.s32.totalorder %s118, %s132
      %p134 = scmp.eq.s32.totalorder %s24, 0
      %p135 = por %p133, %p134
      %s137 = sadd.s32 %s136, 1
      %p140 = scmp.eq.s32.totalorder %s18, 1
      %p141 = scmp.ne.s32.totalorder %s136, %s138
      %p142 = scmp.eq.s32.totalorder %s18, 0
      %p143 = por %p141, %p142
      %p144 = scmp.ne.s32.totalorder %s136, %s138
      %p145 = scmp.eq.s32.totalorder %s23, 1
      %p146 = por %p144, %p145
      %p147 = scmp.ne.s32.totalorder %s138, %s139
      %p148 = scmp.eq.s32.totalorder %s23, 0
      %p149 = por %p147, %p148
      %p150 = scmp.ne.s32.totalorder %s138, %s139
      %p151 = scmp.eq.s32.totalorder %s24, 1
      %p152 = por %p150, %p151
      %p154 = scmp.ne.s32.totalorder %s139, %s153
      %p155 = scmp.eq.s32.totalorder %s24, 0
      %p156 = por %p154, %p155
      %s157 = ssub.s32 %s18, %s25
      %p158 = scmp.eq.s32.totalorder %s157, 0
      %s160 = sadd.s32 %s159, 1
      %s161 = scalar_select %p158, %s159, %s160
      %p164 = pneg %p158
      %p165 = scmp.eq.s32.totalorder %s18, 1
      %p166 = por %p164, %p165
      %p167 = scmp.ne.s32.totalorder %s159, %s162
      %p168 = scmp.eq.s32.totalorder %s18, 0
      %p169 = por %p167, %p168
      %p170 = scmp.ne.s32.totalorder %s159, %s162
      %p171 = scmp.eq.s32.totalorder %s23, 1
      %p172 = por %p170, %p171
      %p173 = scmp.ne.s32.totalorder %s162, %s163
      %p174 = scmp.eq.s32.totalorder %s23, 0
      %p175 = por %p173, %p174
      %p176 = scmp.ne.s32.totalorder %s162, %s163
      %p177 = scmp.eq.s32.totalorder %s24, 1
      %p178 = por %p176, %p177
      %p180 = scmp.ne.s32.totalorder %s163, %s179
      %p181 = scmp.eq.s32.totalorder %s24, 0
      %p182 = por %p180, %p181
      %p183 = scmp.le.s32.totalorder 1, %s18
      %p184 = scmp.lt.s32.totalorder %s18, 3
      %p185 = pnand %p183, %p184
      %p186 = pneg %p185
      // Predicated region
      $region9: #{tpu_custom_call.1} parent=5 // pred_check
        _
      $region10: #{tpu_custom_call.1} parent=5 // pred_check_branch
        %188 = sbr.rel (%p185) target = $region12
      $region11: #{tpu_custom_call.1} parent=5 // pred_region
        %s189 = ssub.s32 %s18, 1
        // Predicated region
        $region13: #{tpu_custom_call.1} parent=11 // pred_check
          %p190 = pneg %p65
        $region14: #{tpu_custom_call.1} parent=11 // pred_check_branch
          %192 = sbr.rel (%p190) target = $region16
        $region15: #{tpu_custom_call.1} parent=11 // pred_region
          _
        $region16: #{tpu_custom_call.1} parent=11 // pred_fallthru
          _
        // Predicated region
        $region17: #{tpu_custom_call.1} parent=11 // pred_check
          %p193 = pneg %p86
        $region18: #{tpu_custom_call.1} parent=11 // pred_check_branch
          %195 = sbr.rel (%p193) target = $region20
        $region19: #{tpu_custom_call.1} parent=11 // pred_region
          _
        $region20: #{tpu_custom_call.1} parent=11 // pred_fallthru
          _
        // Predicated region
        $region21: #{tpu_custom_call.1} parent=11 // pred_check
          %p196 = pneg %p107
        $region22: #{tpu_custom_call.1} parent=11 // pred_check_branch
          %198 = sbr.rel (%p196) target = $region24
        $region23: #{tpu_custom_call.1} parent=11 // pred_region
          _
        $region24: #{tpu_custom_call.1} parent=11 // pred_fallthru
          _
        // Predicated region
        $region25: #{tpu_custom_call.1} parent=11 // pred_check
          %p199 = pneg %p128
        $region26: #{tpu_custom_call.1} parent=11 // pred_check_branch
          %201 = sbr.rel (%p199) target = $region28
        $region27: #{tpu_custom_call.1} parent=11 // pred_region
          _
        $region28: #{tpu_custom_call.1} parent=11 // pred_fallthru
          _
        // Predicated region
        $region29: #{tpu_custom_call.1} parent=11 // pred_check
          %p202 = pneg %p149
        $region30: #{tpu_custom_call.1} parent=11 // pred_check_branch
          %204 = sbr.rel (%p202) target = $region32
        $region31: #{tpu_custom_call.1} parent=11 // pred_region
          _
        $region32: #{tpu_custom_call.1} parent=11 // pred_fallthru
          _
      $region12: #{tpu_custom_call.1} parent=5 // pred_fallthru
        _
      %p205 = scmp.lt.s32.totalorder %s18, 2
      // Predicated region
      $region33: #{tpu_custom_call.1} parent=5 // pred_check
        %p206 = pneg %p205
      $region34: #{tpu_custom_call.1} parent=5 // pred_check_branch
        %208 = sbr.rel (%p206) target = $region36
      $region35: #{tpu_custom_call.1} parent=5 // pred_region
        // Predicated region
        $region37: #{tpu_custom_call.1} parent=35 // pred_check
          %p209 = pneg %p38
        $region38: #{tpu_custom_call.1} parent=35 // pred_check_branch
          %211 = sbr.rel (%p209) target = $region40
        $region39: #{tpu_custom_call.1} parent=35 // pred_region
          %s212 = sand.u32 %s28, 1
          %s213 = scalar_lea.sflag [#allocation4], %s212
          %s214 = sand.u32 %s28, 1
          %s215 = smul.addr %s214, 64
          %s216 = scalar_lea.vmem [#allocation3], %s215
          %s218 = ssub.s32 1024, 1024
          %219 = vsyncadd %s213, %s218
          %s220 = smul.addr %s18, 16
          %s221 = smul.addr %s220, 64
          %s222 = scalar_lea.hbm %s0, %s221
          %s223 = sshll.u32 %s216, 4
          %s224 = int_to_ptr.vmem [resolvable:$true] %s223
          %229 = dma.hbm_to_vmem [thread:$0]  %s222, 1024, %s224, %s213, 512, 512, 32
        $region40: #{tpu_custom_call.1} parent=35 // pred_fallthru
          _
      $region36: #{tpu_custom_call.1} parent=5 // pred_fallthru
        _
      %p230 = scmp.le.s32.totalorder 1, %s18
      %p231 = scmp.lt.s32.totalorder %s18, 3
      %p232 = pnand %p230, %p231
      %p233 = pneg %p232
      // Predicated region
      $region41: #{tpu_custom_call.1} parent=5 // pred_check
        _
      $region42: #{tpu_custom_call.1} parent=5 // pred_check_branch
        %235 = sbr.rel (%p232) target = $region44
      $region43: #{tpu_custom_call.1} parent=5 // pred_region
        %s236 = ssub.s32 %s18, 1
        %s237 = sand.u32 %s31, 1
        %s238 = scalar_lea.sflag [#allocation4], %s237
        %s239 = sand.u32 %s31, 1
        %s240 = smul.addr %s239, 64
        %s241 = scalar_lea.vmem [#allocation3], %s240
        // Predicated region
        $region45: #{tpu_custom_call.1} parent=43 // pred_check
          %p242 = pneg %p44
        $region46: #{tpu_custom_call.1} parent=43 // pred_check_branch
          %244 = sbr.rel (%p242) target = $region48
        $region47: #{tpu_custom_call.1} parent=43 // pred_region
          %245 = dma.done %s238, 1024
        $region48: #{tpu_custom_call.1} parent=43 // pred_fallthru
          _
        %s246 = sand.u32 %s31, 1
        %s247 = scalar_lea.sflag [#allocation4], %s246
        %s248 = sand.u32 %s31, 1
        %s249 = smul.addr %s248, 64
        %s250 = scalar_lea.vmem [#allocation3], %s249
        %p251 = pneg %p44
        %p252 = pneg %p41
        %p253 = pneg %p65
        %p254 = pneg %p62
        %p255 = pneg %p86
        %p256 = pneg %p83
        %p257 = pneg %p107
        %p258 = pneg %p104
        %p259 = pneg %p128
        %p260 = pneg %p125
        %p261 = pneg %p149
        %p262 = pneg %p146
        %p263 = pneg %p175
        %p264 = pneg %p172
        %s265 = sand.u32 %s162, 1
        %s266 = scalar_lea.sflag [#allocation5], %s265
        %s267 = sand.u32 %s162, 1
        %s268 = smul.addr %s267, 512
        %s269 = scalar_lea.vmem [#allocation6], %s268
        %v271 = vld [vmem:[%s241] sm:$0xff]
        %v272 = vld [vmem:[%s241 + $0x8] sm:$0xff]
        %v273 = vld [vmem:[%s241 + $0x10] sm:$0xff]
        %v274 = vld [vmem:[%s241 + $0x18] sm:$0xff]
        %v275 = vld [vmem:[%s241 + $0x20] sm:$0xff]
        %v276 = vld [vmem:[%s241 + $0x28] sm:$0xff]
        %v277 = vld [vmem:[%s241 + $0x30] sm:$0xff]
        %v278 = vld [vmem:[%s241 + $0x38] sm:$0xff]
        %v279 = vld [vmem:[%s5] sm:$0xff]
        %v280 = vld [vmem:[%s5 + $0x8] sm:$0xff]
        %v281 = vld [vmem:[%s5 + $0x10] sm:$0xff]
        %v282 = vld [vmem:[%s5 + $0x18] sm:$0xff]
        %v283 = vld [vmem:[%s1] sm:$0xf]
        %v284 = vld [vmem:[%s1 + $0x4] sm:$0xf]
        %v285 = vld [vmem:[%s1 + $0x8] sm:$0xf]
        %v286 = vld [vmem:[%s1 + $0xc] sm:$0xf]
        %288 = vset.pattern.permute.xlu0 0
        %289 = vperm.xlu0 %288, %v279
        %v290 = vpop.permute.xlu0 %289
        %293 = vset.pattern.permute.xlu0 0
        %294 = vperm.xlu0 %293, %v280
        %v295 = vpop.permute.xlu0 %294
        %298 = vset.pattern.permute.xlu0 0
        %299 = vperm.xlu0 %298, %v281
        %v300 = vpop.permute.xlu0 %299
        %303 = vset.pattern.permute.xlu0 0
        %304 = vperm.xlu0 %303, %v282
        %v305 = vpop.permute.xlu0 %304
        %v311 = vunpack.c.l.b16 %v283
        %v312 = vunpack.c.l.b16 %v284
        %v313 = vunpack.c.l.b16 %v285
        %v314 = vunpack.c.l.b16 %v286
        %v315 = vpack.c.b16 %v312, %v311
        %v316 = vpack.c.b16 %v314, %v313
        %v319 = vunpack.c.l.b16 %v271
        %v320 = vunpack.c.h.b16 %v271
        %v321 = vunpack.c.l.b16 %v275
        %v322 = vunpack.c.h.b16 %v275
        %v323 = vpack.c.b16 %v321, %v319
        %v324 = vpack.c.b16 %v322, %v320
        %vm327 = vcmask 130048
        %v329 = vsel %vm327, %v315, 0
        %v332 = vsel %vm327, %v316, 0
        %334 = vmatprep.subr.bf16.mxu0 %v324
        %335 = vmatpush1.bf16.msra.mxu0 %v323
        %336 = vmatprep.subr.bf16.mxu0 0
        %337 = vmatpush1.bf16.msra.mxu0 0
        %338 = vmatprep.subr.bf16.mxu0 0
        %339 = vmatpush1.bf16.msra.mxu0 0
        %340 = vmatprep.subr.bf16.mxu0 0
        %341 = vmatpush1.bf16.msra.mxu0 0
        %342 = vmatprep.subr.bf16.mxu0 0
        %343 = vmatpush1.bf16.msra.mxu0 0
        %344 = vmatprep.subr.bf16.mxu0 0
        %345 = vmatpush1.bf16.msra.mxu0 0
        %346 = vmatprep.subr.bf16.mxu0 0
        %347 = vmatpush1.bf16.msra.mxu0 0
        %348 = vmatprep.subr.bf16.mxu0 0
        %349 = vmatpush1.bf16.msra.mxu0 0
        %350 = vmatprep.subr.bf16.mxu0 0
        %351 = vmatpush1.bf16.msra.mxu0 0
        %352 = vmatprep.subr.bf16.mxu0 0
        %353 = vmatpush1.bf16.msra.mxu0 0
        %354 = vmatprep.subr.bf16.mxu0 0
        %355 = vmatpush1.bf16.msra.mxu0 0
        %356 = vmatprep.subr.bf16.mxu0 0
        %357 = vmatpush1.bf16.msra.mxu0 0
        %358 = vmatprep.subr.bf16.mxu0 0
        %359 = vmatpush1.bf16.msra.mxu0 0
        %360 = vmatprep.subr.bf16.mxu0 0
        %361 = vmatpush1.bf16.msra.mxu0 0
        %362 = vmatprep.subr.bf16.mxu0 0
        %363 = vmatpush1.bf16.msra.mxu0 0
        %364 = vmatprep.subr.bf16.mxu0 0
        %365 = vmatpush1.bf16.msra.mxu0 0
        %366 = vmatprep.mubr.bf16.mxu0 0
        %367 = vmatmul.mubr.bf16.gmra.mrb[0].mxu0 %v329
        %v368 = vpop.f32.mrb[0].mxu0
        %v369 = vadd.f32 %v290, %v368
        %v370 = vpop.f32.mrb[0].mxu0
        %v371 = vadd.f32 %v290, %v370
        %v372 = vpop.f32.mrb[0].mxu0
        %v373 = vadd.f32 %v295, %v372
        %v374 = vpop.f32.mrb[0].mxu0
        %v375 = vadd.f32 %v295, %v374
        %376 = vmatprep.mubr.bf16.mxu0 0
        %377 = vmatmul.mubr.bf16.gmra.mrb[0].mxu0 %v332
        %v378 = vpop.f32.mrb[0].mxu0
        %v379 = vadd.f32 %v300, %v378
        %v380 = vpop.f32.mrb[0].mxu0
        %v381 = vadd.f32 %v300, %v380
        %v382 = vpop.f32.mrb[0].mxu0
        %v383 = vadd.f32 %v305, %v382
        %v384 = vpop.f32.mrb[0].mxu0
        %v385 = vadd.f32 %v305, %v384
        %386 = vdwg.mxu0
        %v387 = vmax.f32 %v369, 0.0
        %v388 = vmax.f32 %v371, 0.0
        %v389 = vmax.f32 %v373, 0.0
        %v390 = vmax.f32 %v375, 0.0
        %v391 = vmax.f32 %v379, 0.0
        %v392 = vmax.f32 %v381, 0.0
        %v393 = vmax.f32 %v383, 0.0
        %v394 = vmax.f32 %v385, 0.0
        %395 = vst [vmem:[#allocation2] sm:$0xff] %v387
        %396 = vst [vmem:[#allocation2 + $0x8] sm:$0xff] %v388
        %397 = vst [vmem:[#allocation2 + $0x40] sm:$0xff] %v389
        %398 = vst [vmem:[#allocation2 + $0x48] sm:$0xff] %v390
        %399 = vst [vmem:[#allocation2 + $0x80] sm:$0xff] %v391
        %400 = vst [vmem:[#allocation2 + $0x88] sm:$0xff] %v392
        %401 = vst [vmem:[#allocation2 + $0xc0] sm:$0xff] %v393
        %402 = vst [vmem:[#allocation2 + $0xc8] sm:$0xff] %v394
        %v403 = vld [vmem:[%s1] sm:$0xf]
        %v404 = vld [vmem:[%s1 + $0x4] sm:$0xf]
        %v405 = vld [vmem:[%s1 + $0x8] sm:$0xf]
        %v406 = vld [vmem:[%s1 + $0xc] sm:$0xf]
        %v411 = vunpack.c.l.b16 %v403
        %v412 = vunpack.c.l.b16 %v404
        %v413 = vunpack.c.l.b16 %v405
        %v414 = vunpack.c.l.b16 %v406
        %v415 = vpack.c.b16 %v412, %v411
        %v416 = vpack.c.b16 %v414, %v413
        %v419 = vunpack.c.l.b16 %v272
        %v420 = vunpack.c.h.b16 %v272
        %v421 = vunpack.c.l.b16 %v276
        %v422 = vunpack.c.h.b16 %v276
        %v423 = vpack.c.b16 %v421, %v419
        %v424 = vpack.c.b16 %v422, %v420
        %v428 = vsel %vm327, %v415, 0
        %v431 = vsel %vm327, %v416, 0
        %433 = vmatprep.subr.bf16.mxu0 %v424
        %434 = vmatpush1.bf16.msra.mxu0 %v423
        %435 = vmatprep.subr.bf16.mxu0 0
        %436 = vmatpush1.bf16.msra.mxu0 0
        %437 = vmatprep.subr.bf16.mxu0 0
        %438 = vmatpush1.bf16.msra.mxu0 0
        %439 = vmatprep.subr.bf16.mxu0 0
        %440 = vmatpush1.bf16.msra.mxu0 0
        %441 = vmatprep.subr.bf16.mxu0 0
        %442 = vmatpush1.bf16.msra.mxu0 0
        %443 = vmatprep.subr.bf16.mxu0 0
        %444 = vmatpush1.bf16.msra.mxu0 0
        %445 = vmatprep.subr.bf16.mxu0 0
        %446 = vmatpush1.bf16.msra.mxu0 0
        %447 = vmatprep.subr.bf16.mxu0 0
        %448 = vmatpush1.bf16.msra.mxu0 0
        %449 = vmatprep.subr.bf16.mxu0 0
        %450 = vmatpush1.bf16.msra.mxu0 0
        %451 = vmatprep.subr.bf16.mxu0 0
        %452 = vmatpush1.bf16.msra.mxu0 0
        %453 = vmatprep.subr.bf16.mxu0 0
        %454 = vmatpush1.bf16.msra.mxu0 0
        %455 = vmatprep.subr.bf16.mxu0 0
        %456 = vmatpush1.bf16.msra.mxu0 0
        %457 = vmatprep.subr.bf16.mxu0 0
        %458 = vmatpush1.bf16.msra.mxu0 0
        %459 = vmatprep.subr.bf16.mxu0 0
        %460 = vmatpush1.bf16.msra.mxu0 0
        %461 = vmatprep.subr.bf16.mxu0 0
        %462 = vmatpush1.bf16.msra.mxu0 0
        %463 = vmatprep.subr.bf16.mxu0 0
        %464 = vmatpush1.bf16.msra.mxu0 0
        %465 = vmatprep.mubr.bf16.mxu0 0
        %466 = vmatmul.mubr.bf16.gmra.mrb[0].mxu0 %v428
        %v467 = vpop.f32.mrb[0].mxu0
        %v468 = vadd.f32 %v290, %v467
        %v469 = vpop.f32.mrb[0].mxu0
        %v470 = vadd.f32 %v290, %v469
        %v471 = vpop.f32.mrb[0].mxu0
        %v472 = vadd.f32 %v295, %v471
        %v473 = vpop.f32.mrb[0].mxu0
        %v474 = vadd.f32 %v295, %v473
        %475 = vmatprep.mubr.bf16.mxu0 0
        %476 = vmatmul.mubr.bf16.gmra.mrb[0].mxu0 %v431
        %v477 = vpop.f32.mrb[0].mxu0
        %v478 = vadd.f32 %v300, %v477
        %v479 = vpop.f32.mrb[0].mxu0
        %v480 = vadd.f32 %v300, %v479
        %v481 = vpop.f32.mrb[0].mxu0
        %v482 = vadd.f32 %v305, %v481
        %v483 = vpop.f32.mrb[0].mxu0
        %v484 = vadd.f32 %v305, %v483
        %485 = vdwg.mxu0
        %v486 = vmax.f32 %v468, 0.0
        %v487 = vmax.f32 %v470, 0.0
        %v488 = vmax.f32 %v472, 0.0
        %v489 = vmax.f32 %v474, 0.0
        %v490 = vmax.f32 %v478, 0.0
        %v491 = vmax.f32 %v480, 0.0
        %v492 = vmax.f32 %v482, 0.0
        %v493 = vmax.f32 %v484, 0.0
        %494 = vst [vmem:[#allocation2 + $0x10] sm:$0xff] %v486
        %495 = vst [vmem:[#allocation2 + $0x18] sm:$0xff] %v487
        %496 = vst [vmem:[#allocation2 + $0x50] sm:$0xff] %v488
        %497 = vst [vmem:[#allocation2 + $0x58] sm:$0xff] %v489
        %498 = vst [vmem:[#allocation2 + $0x90] sm:$0xff] %v490
        %499 = vst [vmem:[#allocation2 + $0x98] sm:$0xff] %v491
        %500 = vst [vmem:[#allocation2 + $0xd0] sm:$0xff] %v492
        %501 = vst [vmem:[#allocation2 + $0xd8] sm:$0xff] %v493
        %v502 = vld [vmem:[%s1] sm:$0xf]
        %v503 = vld [vmem:[%s1 + $0x4] sm:$0xf]
        %v504 = vld [vmem:[%s1 + $0x8] sm:$0xf]
        %v505 = vld [vmem:[%s1 + $0xc] sm:$0xf]
        %v510 = vunpack.c.l.b16 %v502
        %v511 = vunpack.c.l.b16 %v503
        %v512 = vunpack.c.l.b16 %v504
        %v513 = vunpack.c.l.b16 %v505
        %v514 = vpack.c.b16 %v511, %v510
        %v515 = vpack.c.b16 %v513, %v512
        %v518 = vunpack.c.l.b16 %v273
        %v519 = vunpack.c.h.b16 %v273
        %v520 = vunpack.c.l.b16 %v277
        %v521 = vunpack.c.h.b16 %v277
        %v522 = vpack.c.b16 %v520, %v518
        %v523 = vpack.c.b16 %v521, %v519
        %v527 = vsel %vm327, %v514, 0
        %v530 = vsel %vm327, %v515, 0
        %532 = vmatprep.subr.bf16.mxu0 %v523
        %533 = vmatpush1.bf16.msra.mxu0 %v522
        %534 = vmatprep.subr.bf16.mxu0 0
        %535 = vmatpush1.bf16.msra.mxu0 0
        %536 = vmatprep.subr.bf16.mxu0 0
        %537 = vmatpush1.bf16.msra.mxu0 0
        %538 = vmatprep.subr.bf16.mxu0 0
        %539 = vmatpush1.bf16.msra.mxu0 0
        %540 = vmatprep.subr.bf16.mxu0 0
        %541 = vmatpush1.bf16.msra.mxu0 0
        %542 = vmatprep.subr.bf16.mxu0 0
        %543 = vmatpush1.bf16.msra.mxu0 0
        %544 = vmatprep.subr.bf16.mxu0 0
        %545 = vmatpush1.bf16.msra.mxu0 0
        %546 = vmatprep.subr.bf16.mxu0 0
        %547 = vmatpush1.bf16.msra.mxu0 0
        %548 = vmatprep.subr.bf16.mxu0 0
        %549 = vmatpush1.bf16.msra.mxu0 0
        %550 = vmatprep.subr.bf16.mxu0 0
        %551 = vmatpush1.bf16.msra.mxu0 0
        %552 = vmatprep.subr.bf16.mxu0 0
        %553 = vmatpush1.bf16.msra.mxu0 0
        %554 = vmatprep.subr.bf16.mxu0 0
        %555 = vmatpush1.bf16.msra.mxu0 0
        %556 = vmatprep.subr.bf16.mxu0 0
        %557 = vmatpush1.bf16.msra.mxu0 0
        %558 = vmatprep.subr.bf16.mxu0 0
        %559 = vmatpush1.bf16.msra.mxu0 0
        %560 = vmatprep.subr.bf16.mxu0 0
        %561 = vmatpush1.bf16.msra.mxu0 0
        %562 = vmatprep.subr.bf16.mxu0 0
        %563 = vmatpush1.bf16.msra.mxu0 0
        %564 = vmatprep.mubr.bf16.mxu0 0
        %565 = vmatmul.mubr.bf16.gmra.mrb[0].mxu0 %v527
        %v566 = vpop.f32.mrb[0].mxu0
        %v567 = vadd.f32 %v290, %v566
        %v568 = vpop.f32.mrb[0].mxu0
        %v569 = vadd.f32 %v290, %v568
        %v570 = vpop.f32.mrb[0].mxu0
        %v571 = vadd.f32 %v295, %v570
        %v572 = vpop.f32.mrb[0].mxu0
        %v573 = vadd.f32 %v295, %v572
        %574 = vmatprep.mubr.bf16.mxu0 0
        %575 = vmatmul.mubr.bf16.gmra.mrb[0].mxu0 %v530
        %v576 = vpop.f32.mrb[0].mxu0
        %v577 = vadd.f32 %v300, %v576
        %v578 = vpop.f32.mrb[0].mxu0
        %v579 = vadd.f32 %v300, %v578
        %v580 = vpop.f32.mrb[0].mxu0
        %v581 = vadd.f32 %v305, %v580
        %v582 = vpop.f32.mrb[0].mxu0
        %v583 = vadd.f32 %v305, %v582
        %584 = vdwg.mxu0
        %v585 = vmax.f32 %v567, 0.0
        %v586 = vmax.f32 %v569, 0.0
        %v587 = vmax.f32 %v571, 0.0
        %v588 = vmax.f32 %v573, 0.0
        %v589 = vmax.f32 %v577, 0.0
        %v590 = vmax.f32 %v579, 0.0
        %v591 = vmax.f32 %v581, 0.0
        %v592 = vmax.f32 %v583, 0.0
        %593 = vst [vmem:[#allocation2 + $0x20] sm:$0xff] %v585
        %594 = vst [vmem:[#allocation2 + $0x28] sm:$0xff] %v586
        %595 = vst [vmem:[#allocation2 + $0x60] sm:$0xff] %v587
        %596 = vst [vmem:[#allocation2 + $0x68] sm:$0xff] %v588
        %597 = vst [vmem:[#allocation2 + $0xa0] sm:$0xff] %v589
        %598 = vst [vmem:[#allocation2 + $0xa8] sm:$0xff] %v590
        %599 = vst [vmem:[#allocation2 + $0xe0] sm:$0xff] %v591
        %600 = vst [vmem:[#allocation2 + $0xe8] sm:$0xff] %v592
        %v601 = vld [vmem:[%s1] sm:$0xf]
        %v602 = vld [vmem:[%s1 + $0x4] sm:$0xf]
        %v603 = vld [vmem:[%s1 + $0x8] sm:$0xf]
        %v604 = vld [vmem:[%s1 + $0xc] sm:$0xf]
        %v609 = vunpack.c.l.b16 %v601
        %v610 = vunpack.c.l.b16 %v602
        %v611 = vunpack.c.l.b16 %v603
        %v612 = vunpack.c.l.b16 %v604
        %v613 = vpack.c.b16 %v610, %v609
        %v614 = vpack.c.b16 %v612, %v611
        %v617 = vunpack.c.l.b16 %v274
        %v618 = vunpack.c.h.b16 %v274
        %v619 = vunpack.c.l.b16 %v278
        %v620 = vunpack.c.h.b16 %v278
        %v621 = vpack.c.b16 %v619, %v617
        %v622 = vpack.c.b16 %v620, %v618
        %v626 = vsel %vm327, %v613, 0
        %v629 = vsel %vm327, %v614, 0
        %631 = vmatprep.subr.bf16.mxu0 %v622
        %632 = vmatpush1.bf16.msra.mxu0 %v621
        %633 = vmatprep.subr.bf16.mxu0 0
        %634 = vmatpush1.bf16.msra.mxu0 0
        %635 = vmatprep.subr.bf16.mxu0 0
        %636 = vmatpush1.bf16.msra.mxu0 0
        %637 = vmatprep.subr.bf16.mxu0 0
        %638 = vmatpush1.bf16.msra.mxu0 0
        %639 = vmatprep.subr.bf16.mxu0 0
        %640 = vmatpush1.bf16.msra.mxu0 0
        %641 = vmatprep.subr.bf16.mxu0 0
        %642 = vmatpush1.bf16.msra.mxu0 0
        %643 = vmatprep.subr.bf16.mxu0 0
        %644 = vmatpush1.bf16.msra.mxu0 0
        %645 = vmatprep.subr.bf16.mxu0 0
        %646 = vmatpush1.bf16.msra.mxu0 0
        %647 = vmatprep.subr.bf16.mxu0 0
        %648 = vmatpush1.bf16.msra.mxu0 0
        %649 = vmatprep.subr.bf16.mxu0 0
        %650 = vmatpush1.bf16.msra.mxu0 0
        %651 = vmatprep.subr.bf16.mxu0 0
        %652 = vmatpush1.bf16.msra.mxu0 0
        %653 = vmatprep.subr.bf16.mxu0 0
        %654 = vmatpush1.bf16.msra.mxu0 0
        %655 = vmatprep.subr.bf16.mxu0 0
        %656 = vmatpush1.bf16.msra.mxu0 0
        %657 = vmatprep.subr.bf16.mxu0 0
        %658 = vmatpush1.bf16.msra.mxu0 0
        %659 = vmatprep.subr.bf16.mxu0 0
        %660 = vmatpush1.bf16.msra.mxu0 0
        %661 = vmatprep.subr.bf16.mxu0 0
        %662 = vmatpush1.bf16.msra.mxu0 0
        %663 = vmatprep.mubr.bf16.mxu0 0
        %664 = vmatmul.mubr.bf16.gmra.mrb[0].mxu0 %v626
        %v665 = vpop.f32.mrb[0].mxu0
        %v666 = vadd.f32 %v290, %v665
        %v667 = vpop.f32.mrb[0].mxu0
        %v668 = vadd.f32 %v290, %v667
        %v669 = vpop.f32.mrb[0].mxu0
        %v670 = vadd.f32 %v295, %v669
        %v671 = vpop.f32.mrb[0].mxu0
        %v672 = vadd.f32 %v295, %v671
        %673 = vmatprep.mubr.bf16.mxu0 0
        %674 = vmatmul.mubr.bf16.gmra.mrb[0].mxu0 %v629
        %v675 = vpop.f32.mrb[0].mxu0
        %v676 = vadd.f32 %v300, %v675
        %v677 = vpop.f32.mrb[0].mxu0
        %v678 = vadd.f32 %v300, %v677
        %v679 = vpop.f32.mrb[0].mxu0
        %v680 = vadd.f32 %v305, %v679
        %v681 = vpop.f32.mrb[0].mxu0
        %v682 = vadd.f32 %v305, %v681
        %683 = vdwg.mxu0
        %v684 = vmax.f32 %v666, 0.0
        %v685 = vmax.f32 %v668, 0.0
        %v686 = vmax.f32 %v670, 0.0
        %v687 = vmax.f32 %v672, 0.0
        %v688 = vmax.f32 %v676, 0.0
        %v689 = vmax.f32 %v678, 0.0
        %v690 = vmax.f32 %v680, 0.0
        %v691 = vmax.f32 %v682, 0.0
        %692 = vst [vmem:[#allocation2 + $0x30] sm:$0xff] %v684
        %693 = vst [vmem:[#allocation2 + $0x38] sm:$0xff] %v685
        %694 = vst [vmem:[#allocation2 + $0x70] sm:$0xff] %v686
        %695 = vst [vmem:[#allocation2 + $0x78] sm:$0xff] %v687
        %696 = vst [vmem:[#allocation2 + $0xb0] sm:$0xff] %v688
        %697 = vst [vmem:[#allocation2 + $0xb8] sm:$0xff] %v689
        %698 = vst [vmem:[#allocation2 + $0xf0] sm:$0xff] %v690
        %699 = vst [vmem:[#allocation2 + $0xf8] sm:$0xff] %v691
        %v700 = vld [vmem:[#allocation2] sm:$0xff]
        %v701 = vld [vmem:[#allocation2 + $0x8] sm:$0xff]
        %v702 = vld [vmem:[#allocation2 + $0x10] sm:$0xff]
        %v703 = vld [vmem:[#allocation2 + $0x18] sm:$0xff]
        %v704 = vld [vmem:[#allocation2 + $0x20] sm:$0xff]
        %v705 = vld [vmem:[#allocation2 + $0x28] sm:$0xff]
        %v706 = vld [vmem:[#allocation2 + $0x30] sm:$0xff]
        %v707 = vld [vmem:[#allocation2 + $0x38] sm:$0xff]
        %v708 = vld [vmem:[%s3] sm:$0xf]
        %v709 = vld [vmem:[%s3 + $0x4] sm:$0xf]
        %v710 = vld [vmem:[%s3 + $0x8] sm:$0xf]
        %v711 = vld [vmem:[%s3 + $0xc] sm:$0xf]
        %v712 = vpack.c.bf16 %v702, %v700
        %v713 = vpack.c.bf16 %v703, %v701
        %v714 = vpack.c.bf16 %v706, %v704
        %v715 = vpack.c.bf16 %v707, %v705
        %716 = vset.pattern.permute.xlu0 2
        %717 = vperm.xlu0 %716, %v279
        %v718 = vpop.permute.xlu0 %717
        %720 = vset.pattern.permute.xlu0 2
        %721 = vperm.xlu0 %720, %v280
        %v722 = vpop.permute.xlu0 %721
        %724 = vset.pattern.permute.xlu0 2
        %725 = vperm.xlu0 %724, %v281
        %v726 = vpop.permute.xlu0 %725
        %728 = vset.pattern.permute.xlu0 2
        %729 = vperm.xlu0 %728, %v282
        %v730 = vpop.permute.xlu0 %729
        %v736 = vunpack.c.l.b16 %v708
        %v737 = vunpack.c.l.b16 %v709
        %v738 = vunpack.c.l.b16 %v710
        %v739 = vunpack.c.l.b16 %v711
        %v740 = vpack.c.b16 %v737, %v736
        %v741 = vpack.c.b16 %v739, %v738
        %vm742 = vcmask 261120
        %v744 = vsel %vm742, %v740, 0
        %v747 = vsel %vm742, %v741, 0
        %749 = vmatprep.subr.bf16.mxu0 %v713
        %750 = vmatpush1.bf16.msra.mxu0 %v712
        %751 = vmatprep.subr.bf16.mxu0 %v715
        %752 = vmatpush1.bf16.msra.mxu0 %v714
        %753 = vmatprep.subr.bf16.mxu0 0
        %754 = vmatpush1.bf16.msra.mxu0 0
        %755 = vmatprep.subr.bf16.mxu0 0
        %756 = vmatpush1.bf16.msra.mxu0 0
        %757 = vmatprep.subr.bf16.mxu0 0
        %758 = vmatpush1.bf16.msra.mxu0 0
        %759 = vmatprep.subr.bf16.mxu0 0
        %760 = vmatpush1.bf16.msra.mxu0 0
        %761 = vmatprep.subr.bf16.mxu0 0
        %762 = vmatpush1.bf16.msra.mxu0 0
        %763 = vmatprep.subr.bf16.mxu0 0
        %764 = vmatpush1.bf16.msra.mxu0 0
        %765 = vmatprep.subr.bf16.mxu0 0
        %766 = vmatpush1.bf16.msra.mxu0 0
        %767 = vmatprep.subr.bf16.mxu0 0
        %768 = vmatpush1.bf16.msra.mxu0 0
        %769 = vmatprep.subr.bf16.mxu0 0
        %770 = vmatpush1.bf16.msra.mxu0 0
        %771 = vmatprep.subr.bf16.mxu0 0
        %772 = vmatpush1.bf16.msra.mxu0 0
        %773 = vmatprep.subr.bf16.mxu0 0
        %774 = vmatpush1.bf16.msra.mxu0 0
        %775 = vmatprep.subr.bf16.mxu0 0
        %776 = vmatpush1.bf16.msra.mxu0 0
        %777 = vmatprep.subr.bf16.mxu0 0
        %778 = vmatpush1.bf16.msra.mxu0 0
        %779 = vmatprep.subr.bf16.mxu0 0
        %780 = vmatpush1.bf16.msra.mxu0 0
        %781 = vmatprep.mubr.bf16.mxu0 0
        %782 = vmatmul.mubr.bf16.gmra.mrb[0].mxu0 %v744
        %v783 = vpop.f32.mrb[0].mxu0
        %v784 = vadd.f32 %v718, %v783
        %v785 = vpop.f32.mrb[0].mxu0
        %v786 = vadd.f32 %v718, %v785
        %v787 = vpop.f32.mrb[0].mxu0
        %v788 = vadd.f32 %v722, %v787
        %v789 = vpop.f32.mrb[0].mxu0
        %v790 = vadd.f32 %v722, %v789
        %791 = vmatprep.mubr.bf16.mxu0 0
        %792 = vmatmul.mubr.bf16.gmra.mrb[0].mxu0 %v747
        %v793 = vpop.f32.mrb[0].mxu0
        %v794 = vadd.f32 %v726, %v793
        %v795 = vpop.f32.mrb[0].mxu0
        %v796 = vadd.f32 %v726, %v795
        %v797 = vpop.f32.mrb[0].mxu0
        %v798 = vadd.f32 %v730, %v797
        %v799 = vpop.f32.mrb[0].mxu0
        %v800 = vadd.f32 %v730, %v799
        %801 = vdwg.mxu0
        %v802 = vmax.f32 %v784, 0.0
        %v803 = vmax.f32 %v786, 0.0
        %v804 = vmax.f32 %v788, 0.0
        %v805 = vmax.f32 %v790, 0.0
        %v806 = vmax.f32 %v794, 0.0
        %v807 = vmax.f32 %v796, 0.0
        %v808 = vmax.f32 %v798, 0.0
        %v809 = vmax.f32 %v800, 0.0
        %v810 = vld [vmem:[%s4] sm:$0xf]
        %v811 = vld [vmem:[%s4 + $0x4] sm:$0xf]
        %v812 = vld [vmem:[%s4 + $0x8] sm:$0xf]
        %v813 = vld [vmem:[%s4 + $0xc] sm:$0xf]
        %v814 = vld [vmem:[%s4 + $0x10] sm:$0xf]
        %v815 = vld [vmem:[%s4 + $0x14] sm:$0xf]
        %v816 = vld [vmem:[%s4 + $0x18] sm:$0xf]
        %v817 = vld [vmem:[%s4 + $0x1c] sm:$0xf]
        %v818 = vpack.c.bf16 %v804, %v802
        %v819 = vpack.c.bf16 %v805, %v803
        %v820 = vpack.c.bf16 %v808, %v806
        %v821 = vpack.c.bf16 %v809, %v807
        %v830 = vunpack.c.l.b16 %v810
        %v831 = vunpack.c.l.b16 %v811
        %v832 = vunpack.c.l.b16 %v812
        %v833 = vunpack.c.l.b16 %v813
        %v834 = vunpack.c.l.b16 %v814
        %v835 = vunpack.c.l.b16 %v815
        %v836 = vunpack.c.l.b16 %v816
        %v837 = vunpack.c.l.b16 %v817
        %v838 = vpack.c.b16 %v831, %v830
        %v839 = vpack.c.b16 %v833, %v832
        %v840 = vpack.c.b16 %v835, %v834
        %v841 = vpack.c.b16 %v837, %v836
        %v843 = vsel %vm742, %v838, 0
        %v846 = vsel %vm742, %v839, 0
        %v849 = vsel %vm742, %v840, 0
        %v852 = vsel %vm742, %v841, 0
        %854 = vmatprep.subr.bf16.mxu0 %v819
        %855 = vmatpush1.bf16.msra.mxu0 %v818
        %856 = vmatprep.subr.bf16.mxu0 %v821
        %857 = vmatpush1.bf16.msra.mxu0 %v820
        %858 = vmatprep.subr.bf16.mxu0 0
        %859 = vmatpush1.bf16.msra.mxu0 0
        %860 = vmatprep.subr.bf16.mxu0 0
        %861 = vmatpush1.bf16.msra.mxu0 0
        %862 = vmatprep.subr.bf16.mxu0 0
        %863 = vmatpush1.bf16.msra.mxu0 0
        %864 = vmatprep.subr.bf16.mxu0 0
        %865 = vmatpush1.bf16.msra.mxu0 0
        %866 = vmatprep.subr.bf16.mxu0 0
        %867 = vmatpush1.bf16.msra.mxu0 0
        %868 = vmatprep.subr.bf16.mxu0 0
        %869 = vmatpush1.bf16.msra.mxu0 0
        %870 = vmatprep.subr.bf16.mxu0 0
        %871 = vmatpush1.bf16.msra.mxu0 0
        %872 = vmatprep.subr.bf16.mxu0 0
        %873 = vmatpush1.bf16.msra.mxu0 0
        %874 = vmatprep.subr.bf16.mxu0 0
        %875 = vmatpush1.bf16.msra.mxu0 0
        %876 = vmatprep.subr.bf16.mxu0 0
        %877 = vmatpush1.bf16.msra.mxu0 0
        %878 = vmatprep.subr.bf16.mxu0 0
        %879 = vmatpush1.bf16.msra.mxu0 0
        %880 = vmatprep.subr.bf16.mxu0 0
        %881 = vmatpush1.bf16.msra.mxu0 0
        %882 = vmatprep.subr.bf16.mxu0 0
        %883 = vmatpush1.bf16.msra.mxu0 0
        %884 = vmatprep.subr.bf16.mxu0 0
        %885 = vmatpush1.bf16.msra.mxu0 0
        %886 = vmatprep.mubr.bf16.mxu0 0
        %887 = vmatmul.mubr.bf16.gmra.mrb[0].mxu0 %v843
        %v888 = vpop.f32.mrb[0].mxu0
        %v889 = vadd.f32 0.0, %v888
        %v890 = vpop.f32.mrb[0].mxu0
        %v891 = vadd.f32 0.0, %v890
        %v892 = vpop.f32.mrb[0].mxu0
        %v893 = vadd.f32 0.0, %v892
        %v894 = vpop.f32.mrb[0].mxu0
        %v895 = vadd.f32 0.0, %v894
        %896 = vmatprep.mubr.bf16.mxu0 0
        %897 = vmatmul.mubr.bf16.gmra.mrb[0].mxu0 %v846
        %v898 = vpop.f32.mrb[0].mxu0
        %v899 = vadd.f32 0.0, %v898
        %v900 = vpop.f32.mrb[0].mxu0
        %v901 = vadd.f32 0.0, %v900
        %v902 = vpop.f32.mrb[0].mxu0
        %v903 = vadd.f32 0.0, %v902
        %v904 = vpop.f32.mrb[0].mxu0
        %v905 = vadd.f32 0.0, %v904
        %906 = vmatprep.mubr.bf16.mxu0 0
        %907 = vmatmul.mubr.bf16.gmra.mrb[0].mxu0 %v849
        %v908 = vpop.f32.mrb[0].mxu0
        %v909 = vadd.f32 0.0, %v908
        %v910 = vpop.f32.mrb[0].mxu0
        %v911 = vadd.f32 0.0, %v910
        %v912 = vpop.f32.mrb[0].mxu0
        %v913 = vadd.f32 0.0, %v912
        %v914 = vpop.f32.mrb[0].mxu0
        %v915 = vadd.f32 0.0, %v914
        %916 = vmatprep.mubr.bf16.mxu0 0
        %917 = vmatmul.mubr.bf16.gmra.mrb[0].mxu0 %v852
        %v918 = vpop.f32.mrb[0].mxu0
        %v919 = vadd.f32 0.0, %v918
        %v920 = vpop.f32.mrb[0].mxu0
        %v921 = vadd.f32 0.0, %v920
        %v922 = vpop.f32.mrb[0].mxu0
        %v923 = vadd.f32 0.0, %v922
        %v924 = vpop.f32.mrb[0].mxu0
        %v925 = vadd.f32 0.0, %v924
        %926 = vdwg.mxu0
        %v927 = vld [vmem:[#allocation2] sm:$0xff]
        %v928 = vld [vmem:[#allocation2 + $0x8] sm:$0xff]
        %v929 = vld [vmem:[#allocation2 + $0x40] sm:$0xff]
        %v930 = vld [vmem:[#allocation2 + $0x48] sm:$0xff]
        %v931 = vld [vmem:[#allocation2 + $0x80] sm:$0xff]
        %v932 = vld [vmem:[#allocation2 + $0x88] sm:$0xff]
        %v933 = vld [vmem:[#allocation2 + $0xc0] sm:$0xff]
        %v934 = vld [vmem:[#allocation2 + $0xc8] sm:$0xff]
        %v935 = vld [vmem:[%s2] sm:$0xf]
        %v936 = vld [vmem:[%s2 + $0x4] sm:$0xf]
        %v937 = vld [vmem:[%s2 + $0x8] sm:$0xf]
        %v938 = vld [vmem:[%s2 + $0xc] sm:$0xf]
        %v939 = vpack.c.bf16 %v929, %v927
        %v940 = vpack.c.bf16 %v930, %v928
        %v941 = vpack.c.bf16 %v933, %v931
        %v942 = vpack.c.bf16 %v934, %v932
        %943 = vset.pattern.permute.xlu0 1
        %944 = vperm.xlu0 %943, %v279
        %v945 = vpop.permute.xlu0 %944
        %947 = vset.pattern.permute.xlu0 1
        %948 = vperm.xlu0 %947, %v280
        %v949 = vpop.permute.xlu0 %948
        %951 = vset.pattern.permute.xlu0 1
        %952 = vperm.xlu0 %951, %v281
        %v953 = vpop.permute.xlu0 %952
        %955 = vset.pattern.permute.xlu0 1
        %956 = vperm.xlu0 %955, %v282
        %v957 = vpop.permute.xlu0 %956
        %v963 = vunpack.c.l.b16 %v935
        %v964 = vunpack.c.l.b16 %v936
        %v965 = vunpack.c.l.b16 %v937
        %v966 = vunpack.c.l.b16 %v938
        %v967 = vpack.c.b16 %v964, %v963
        %v968 = vpack.c.b16 %v966, %v965
        %v970 = vsel %vm742, %v967, 0
        %v973 = vsel %vm742, %v968, 0
        %975 = vmatprep.subr.bf16.mxu0 %v940
        %976 = vmatpush1.bf16.msra.mxu0 %v939
        %977 = vmatprep.subr.bf16.mxu0 %v942
        %978 = vmatpush1.bf16.msra.mxu0 %v941
        %979 = vmatprep.subr.bf16.mxu0 0
        %980 = vmatpush1.bf16.msra.mxu0 0
        %981 = vmatprep.subr.bf16.mxu0 0
        %982 = vmatpush1.bf16.msra.mxu0 0
        %983 = vmatprep.subr.bf16.mxu0 0
        %984 = vmatpush1.bf16.msra.mxu0 0
        %985 = vmatprep.subr.bf16.mxu0 0
        %986 = vmatpush1.bf16.msra.mxu0 0
        %987 = vmatprep.subr.bf16.mxu0 0
        %988 = vmatpush1.bf16.msra.mxu0 0
        %989 = vmatprep.subr.bf16.mxu0 0
        %990 = vmatpush1.bf16.msra.mxu0 0
        %991 = vmatprep.subr.bf16.mxu0 0
        %992 = vmatpush1.bf16.msra.mxu0 0
        %993 = vmatprep.subr.bf16.mxu0 0
        %994 = vmatpush1.bf16.msra.mxu0 0
        %995 = vmatprep.subr.bf16.mxu0 0
        %996 = vmatpush1.bf16.msra.mxu0 0
        %997 = vmatprep.subr.bf16.mxu0 0
        %998 = vmatpush1.bf16.msra.mxu0 0
        %999 = vmatprep.subr.bf16.mxu0 0
        %1000 = vmatpush1.bf16.msra.mxu0 0
        %1001 = vmatprep.subr.bf16.mxu0 0
        %1002 = vmatpush1.bf16.msra.mxu0 0
        %1003 = vmatprep.subr.bf16.mxu0 0
        %1004 = vmatpush1.bf16.msra.mxu0 0
        %1005 = vmatprep.subr.bf16.mxu0 0
        %1006 = vmatpush1.bf16.msra.mxu0 0
        %1007 = vmatprep.mubr.bf16.mxu0 0
        %1008 = vmatmul.mubr.bf16.gmra.mrb[0].mxu0 %v970
        %v1009 = vpop.f32.mrb[0].mxu0
        %v1010 = vadd.f32 %v945, %v1009
        %v1011 = vpop.f32.mrb[0].mxu0
        %v1012 = vadd.f32 %v945, %v1011
        %v1013 = vpop.f32.mrb[0].mxu0
        %v1014 = vadd.f32 %v949, %v1013
        %v1015 = vpop.f32.mrb[0].mxu0
        %v1016 = vadd.f32 %v949, %v1015
        %1017 = vmatprep.mubr.bf16.mxu0 0
        %1018 = vmatmul.mubr.bf16.gmra.mrb[0].mxu0 %v973
        %v1019 = vpop.f32.mrb[0].mxu0
        %v1020 = vadd.f32 %v953, %v1019
        %v1021 = vpop.f32.mrb[0].mxu0
        %v1022 = vadd.f32 %v953, %v1021
        %v1023 = vpop.f32.mrb[0].mxu0
        %v1024 = vadd.f32 %v957, %v1023
        %v1025 = vpop.f32.mrb[0].mxu0
        %v1026 = vadd.f32 %v957, %v1025
        %1027 = vdwg.mxu0
        %v1028 = vmax.f32 %v1010, 0.0
        %v1029 = vmax.f32 %v1012, 0.0
        %v1030 = vmax.f32 %v1014, 0.0
        %v1031 = vmax.f32 %v1016, 0.0
        %v1032 = vmax.f32 %v1020, 0.0
        %v1033 = vmax.f32 %v1022, 0.0
        %v1034 = vmax.f32 %v1024, 0.0
        %v1035 = vmax.f32 %v1026, 0.0
        %v1036 = vadd.f32 %v927, %v1028
        %v1037 = vadd.f32 %v928, %v1029
        %v1038 = vadd.f32 %v929, %v1030
        %v1039 = vadd.f32 %v930, %v1031
        %v1040 = vadd.f32 %v931, %v1032
        %v1041 = vadd.f32 %v932, %v1033
        %v1042 = vadd.f32 %v933, %v1034
        %v1043 = vadd.f32 %v934, %v1035
        %v1044 = vpack.c.bf16 %v1038, %v1036
        %v1045 = vpack.c.bf16 %v1039, %v1037
        %v1046 = vpack.c.bf16 %v1042, %v1040
        %v1047 = vpack.c.bf16 %v1043, %v1041
        %1048 = vmatprep.subr.bf16.mxu0 %v1045
        %1049 = vmatpush1.bf16.msra.mxu0 %v1044
        %1050 = vmatprep.subr.bf16.mxu0 %v1047
        %1051 = vmatpush1.bf16.msra.mxu0 %v1046
        %1052 = vmatprep.subr.bf16.mxu0 0
        %1053 = vmatpush1.bf16.msra.mxu0 0
        %1054 = vmatprep.subr.bf16.mxu0 0
        %1055 = vmatpush1.bf16.msra.mxu0 0
        %1056 = vmatprep.subr.bf16.mxu0 0
        %1057 = vmatpush1.bf16.msra.mxu0 0
        %1058 = vmatprep.subr.bf16.mxu0 0
        %1059 = vmatpush1.bf16.msra.mxu0 0
        %1060 = vmatprep.subr.bf16.mxu0 0
        %1061 = vmatpush1.bf16.msra.mxu0 0
        %1062 = vmatprep.subr.bf16.mxu0 0
        %1063 = vmatpush1.bf16.msra.mxu0 0
        %1064 = vmatprep.subr.bf16.mxu0 0
        %1065 = vmatpush1.bf16.msra.mxu0 0
        %1066 = vmatprep.subr.bf16.mxu0 0
        %1067 = vmatpush1.bf16.msra.mxu0 0
        %1068 = vmatprep.subr.bf16.mxu0 0
        %1069 = vmatpush1.bf16.msra.mxu0 0
        %1070 = vmatprep.subr.bf16.mxu0 0
        %1071 = vmatpush1.bf16.msra.mxu0 0
        %1072 = vmatprep.subr.bf16.mxu0 0
        %1073 = vmatpush1.bf16.msra.mxu0 0
        %1074 = vmatprep.subr.bf16.mxu0 0
        %1075 = vmatpush1.bf16.msra.mxu0 0
        %1076 = vmatprep.subr.bf16.mxu0 0
        %1077 = vmatpush1.bf16.msra.mxu0 0
        %1078 = vmatprep.subr.bf16.mxu0 0
        %1079 = vmatpush1.bf16.msra.mxu0 0
        %1080 = vmatprep.mubr.bf16.mxu0 0
        %1081 = vmatmul.mubr.bf16.gmra.mrb[0].mxu0 %v843
        %v1082 = vpop.f32.mrb[0].mxu0
        %v1083 = vadd.f32 %v889, %v1082
        %v1084 = vpop.f32.mrb[0].mxu0
        %v1085 = vadd.f32 %v891, %v1084
        %v1086 = vpop.f32.mrb[0].mxu0
        %v1087 = vadd.f32 %v893, %v1086
        %v1088 = vpop.f32.mrb[0].mxu0
        %v1089 = vadd.f32 %v895, %v1088
        %1090 = vmatprep.mubr.bf16.mxu0 0
        %1091 = vmatmul.mubr.bf16.gmra.mrb[0].mxu0 %v846
        %v1092 = vpop.f32.mrb[0].mxu0
        %v1093 = vadd.f32 %v899, %v1092
        %v1094 = vpop.f32.mrb[0].mxu0
        %v1095 = vadd.f32 %v901, %v1094
        %v1096 = vpop.f32.mrb[0].mxu0
        %v1097 = vadd.f32 %v903, %v1096
        %v1098 = vpop.f32.mrb[0].mxu0
        %v1099 = vadd.f32 %v905, %v1098
        %1100 = vmatprep.mubr.bf16.mxu0 0
        %1101 = vmatmul.mubr.bf16.gmra.mrb[0].mxu0 %v849
        %v1102 = vpop.f32.mrb[0].mxu0
        %v1103 = vadd.f32 %v909, %v1102
        %v1104 = vpop.f32.mrb[0].mxu0
        %v1105 = vadd.f32 %v911, %v1104
        %v1106 = vpop.f32.mrb[0].mxu0
        %v1107 = vadd.f32 %v913, %v1106
        %v1108 = vpop.f32.mrb[0].mxu0
        %v1109 = vadd.f32 %v915, %v1108
        %1110 = vmatprep.mubr.bf16.mxu0 0
        %1111 = vmatmul.mubr.bf16.gmra.mrb[0].mxu0 %v852
        %v1112 = vpop.f32.mrb[0].mxu0
        %v1113 = vadd.f32 %v919, %v1112
        %v1114 = vpop.f32.mrb[0].mxu0
        %v1115 = vadd.f32 %v921, %v1114
        %v1116 = vpop.f32.mrb[0].mxu0
        %v1117 = vadd.f32 %v923, %v1116
        %v1118 = vpop.f32.mrb[0].mxu0
        %v1119 = vadd.f32 %v925, %v1118
        %1120 = vdwg.mxu0
        %1121 = vst [vmem:[%s269] sm:$0xff] %v1083
        %1122 = vst [vmem:[%s269 + $0x8] sm:$0xff] %v1085
        %1123 = vst [vmem:[%s269 + $0x40] sm:$0xff] %v1087
        %1124 = vst [vmem:[%s269 + $0x48] sm:$0xff] %v1089
        %1125 = vst [vmem:[%s269 + $0x80] sm:$0xff] %v1093
        %1126 = vst [vmem:[%s269 + $0x88] sm:$0xff] %v1095
        %1127 = vst [vmem:[%s269 + $0xc0] sm:$0xff] %v1097
        %1128 = vst [vmem:[%s269 + $0xc8] sm:$0xff] %v1099
        %1129 = vst [vmem:[%s269 + $0x100] sm:$0xff] %v1103
        %1130 = vst [vmem:[%s269 + $0x108] sm:$0xff] %v1105
        %1131 = vst [vmem:[%s269 + $0x140] sm:$0xff] %v1107
        %1132 = vst [vmem:[%s269 + $0x148] sm:$0xff] %v1109
        %1133 = vst [vmem:[%s269 + $0x180] sm:$0xff] %v1113
        %1134 = vst [vmem:[%s269 + $0x188] sm:$0xff] %v1115
        %1135 = vst [vmem:[%s269 + $0x1c0] sm:$0xff] %v1117
        %1136 = vst [vmem:[%s269 + $0x1c8] sm:$0xff] %v1119
        %v1137 = vld [vmem:[#allocation2 + $0x10] sm:$0xff]
        %v1138 = vld [vmem:[#allocation2 + $0x18] sm:$0xff]
        %v1139 = vld [vmem:[#allocation2 + $0x50] sm:$0xff]
        %v1140 = vld [vmem:[#allocation2 + $0x58] sm:$0xff]
        %v1141 = vld [vmem:[#allocation2 + $0x90] sm:$0xff]
        %v1142 = vld [vmem:[#allocation2 + $0x98] sm:$0xff]
        %v1143 = vld [vmem:[#allocation2 + $0xd0] sm:$0xff]
        %v1144 = vld [vmem:[#allocation2 + $0xd8] sm:$0xff]
        %v1145 = vld [vmem:[%s2] sm:$0xf]
        %v1146 = vld [vmem:[%s2 + $0x4] sm:$0xf]
        %v1147 = vld [vmem:[%s2 + $0x8] sm:$0xf]
        %v1148 = vld [vmem:[%s2 + $0xc] sm:$0xf]
        %v1149 = vpack.c.bf16 %v1139, %v1137
        %v1150 = vpack.c.bf16 %v1140, %v1138
        %v1151 = vpack.c.bf16 %v1143, %v1141
        %v1152 = vpack.c.bf16 %v1144, %v1142
        %v1157 = vunpack.c.l.b16 %v1145
        %v1158 = vunpack.c.l.b16 %v1146
        %v1159 = vunpack.c.l.b16 %v1147
        %v1160 = vunpack.c.l.b16 %v1148
        %v1161 = vpack.c.b16 %v1158, %v1157
        %v1162 = vpack.c.b16 %v1160, %v1159
        %v1164 = vsel %vm742, %v1161, 0
        %v1167 = vsel %vm742, %v1162, 0
        %1169 = vmatprep.subr.bf16.mxu0 %v1150
        %1170 = vmatpush1.bf16.msra.mxu0 %v1149
        %1171 = vmatprep.subr.bf16.mxu0 %v1152
        %1172 = vmatpush1.bf16.msra.mxu0 %v1151
        %1173 = vmatprep.subr.bf16.mxu0 0
        %1174 = vmatpush1.bf16.msra.mxu0 0
        %1175 = vmatprep.subr.bf16.mxu0 0
        %1176 = vmatpush1.bf16.msra.mxu0 0
        %1177 = vmatprep.subr.bf16.mxu0 0
        %1178 = vmatpush1.bf16.msra.mxu0 0
        %1179 = vmatprep.subr.bf16.mxu0 0
        %1180 = vmatpush1.bf16.msra.mxu0 0
        %1181 = vmatprep.subr.bf16.mxu0 0
        %1182 = vmatpush1.bf16.msra.mxu0 0
        %1183 = vmatprep.subr.bf16.mxu0 0
        %1184 = vmatpush1.bf16.msra.mxu0 0
        %1185 = vmatprep.subr.bf16.mxu0 0
        %1186 = vmatpush1.bf16.msra.mxu0 0
        %1187 = vmatprep.subr.bf16.mxu0 0
        %1188 = vmatpush1.bf16.msra.mxu0 0
        %1189 = vmatprep.subr.bf16.mxu0 0
        %1190 = vmatpush1.bf16.msra.mxu0 0
        %1191 = vmatprep.subr.bf16.mxu0 0
        %1192 = vmatpush1.bf16.msra.mxu0 0
        %1193 = vmatprep.subr.bf16.mxu0 0
        %1194 = vmatpush1.bf16.msra.mxu0 0
        %1195 = vmatprep.subr.bf16.mxu0 0
        %1196 = vmatpush1.bf16.msra.mxu0 0
        %1197 = vmatprep.subr.bf16.mxu0 0
        %1198 = vmatpush1.bf16.msra.mxu0 0
        %1199 = vmatprep.subr.bf16.mxu0 0
        %1200 = vmatpush1.bf16.msra.mxu0 0
        %1201 = vmatprep.mubr.bf16.mxu0 0
        %1202 = vmatmul.mubr.bf16.gmra.mrb[0].mxu0 %v1164
        %v1203 = vpop.f32.mrb[0].mxu0
        %v1204 = vadd.f32 %v945, %v1203
        %v1205 = vpop.f32.mrb[0].mxu0
        %v1206 = vadd.f32 %v945, %v1205
        %v1207 = vpop.f32.mrb[0].mxu0
        %v1208 = vadd.f32 %v949, %v1207
        %v1209 = vpop.f32.mrb[0].mxu0
        %v1210 = vadd.f32 %v949, %v1209
        %1211 = vmatprep.mubr.bf16.mxu0 0
        %1212 = vmatmul.mubr.bf16.gmra.mrb[0].mxu0 %v1167
        %v1213 = vpop.f32.mrb[0].mxu0
        %v1214 = vadd.f32 %v953, %v1213
        %v1215 = vpop.f32.mrb[0].mxu0
        %v1216 = vadd.f32 %v953, %v1215
        %v1217 = vpop.f32.mrb[0].mxu0
        %v1218 = vadd.f32 %v957, %v1217
        %v1219 = vpop.f32.mrb[0].mxu0
        %v1220 = vadd.f32 %v957, %v1219
        %1221 = vdwg.mxu0
        %v1222 = vmax.f32 %v1204, 0.0
        %v1223 = vmax.f32 %v1206, 0.0
        %v1224 = vmax.f32 %v1208, 0.0
        %v1225 = vmax.f32 %v1210, 0.0
        %v1226 = vmax.f32 %v1214, 0.0
        %v1227 = vmax.f32 %v1216, 0.0
        %v1228 = vmax.f32 %v1218, 0.0
        %v1229 = vmax.f32 %v1220, 0.0
        %v1230 = vadd.f32 %v1137, %v1222
        %v1231 = vadd.f32 %v1138, %v1223
        %v1232 = vadd.f32 %v1139, %v1224
        %v1233 = vadd.f32 %v1140, %v1225
        %v1234 = vadd.f32 %v1141, %v1226
        %v1235 = vadd.f32 %v1142, %v1227
        %v1236 = vadd.f32 %v1143, %v1228
        %v1237 = vadd.f32 %v1144, %v1229
        %v1238 = vpack.c.bf16 %v1232, %v1230
        %v1239 = vpack.c.bf16 %v1233, %v1231
        %v1240 = vpack.c.bf16 %v1236, %v1234
        %v1241 = vpack.c.bf16 %v1237, %v1235
        %v1242 = vld [vmem:[%s4] sm:$0xf]
        %v1243 = vld [vmem:[%s4 + $0x4] sm:$0xf]
        %v1244 = vld [vmem:[%s4 + $0x8] sm:$0xf]
        %v1245 = vld [vmem:[%s4 + $0xc] sm:$0xf]
        %v1246 = vld [vmem:[%s4 + $0x10] sm:$0xf]
        %v1247 = vld [vmem:[%s4 + $0x14] sm:$0xf]
        %v1248 = vld [vmem:[%s4 + $0x18] sm:$0xf]
        %v1249 = vld [vmem:[%s4 + $0x1c] sm:$0xf]
        %v1258 = vunpack.c.l.b16 %v1242
        %v1259 = vunpack.c.l.b16 %v1243
        %v1260 = vunpack.c.l.b16 %v1244
        %v1261 = vunpack.c.l.b16 %v1245
        %v1262 = vunpack.c.l.b16 %v1246
        %v1263 = vunpack.c.l.b16 %v1247
        %v1264 = vunpack.c.l.b16 %v1248
        %v1265 = vunpack.c.l.b16 %v1249
        %v1266 = vpack.c.b16 %v1259, %v1258
        %v1267 = vpack.c.b16 %v1261, %v1260
        %v1268 = vpack.c.b16 %v1263, %v1262
        %v1269 = vpack.c.b16 %v1265, %v1264
        %v1271 = vsel %vm742, %v1266, 0
        %v1274 = vsel %vm742, %v1267, 0
        %v1277 = vsel %vm742, %v1268, 0
        %v1280 = vsel %vm742, %v1269, 0
        %1282 = vmatprep.subr.bf16.mxu0 %v1239
        %1283 = vmatpush1.bf16.msra.mxu0 %v1238
        %1284 = vmatprep.subr.bf16.mxu0 %v1241
        %1285 = vmatpush1.bf16.msra.mxu0 %v1240
        %1286 = vmatprep.subr.bf16.mxu0 0
        %1287 = vmatpush1.bf16.msra.mxu0 0
        %1288 = vmatprep.subr.bf16.mxu0 0
        %1289 = vmatpush1.bf16.msra.mxu0 0
        %1290 = vmatprep.subr.bf16.mxu0 0
        %1291 = vmatpush1.bf16.msra.mxu0 0
        %1292 = vmatprep.subr.bf16.mxu0 0
        %1293 = vmatpush1.bf16.msra.mxu0 0
        %1294 = vmatprep.subr.bf16.mxu0 0
        %1295 = vmatpush1.bf16.msra.mxu0 0
        %1296 = vmatprep.subr.bf16.mxu0 0
        %1297 = vmatpush1.bf16.msra.mxu0 0
        %1298 = vmatprep.subr.bf16.mxu0 0
        %1299 = vmatpush1.bf16.msra.mxu0 0
        %1300 = vmatprep.subr.bf16.mxu0 0
        %1301 = vmatpush1.bf16.msra.mxu0 0
        %1302 = vmatprep.subr.bf16.mxu0 0
        %1303 = vmatpush1.bf16.msra.mxu0 0
        %1304 = vmatprep.subr.bf16.mxu0 0
        %1305 = vmatpush1.bf16.msra.mxu0 0
        %1306 = vmatprep.subr.bf16.mxu0 0
        %1307 = vmatpush1.bf16.msra.mxu0 0
        %1308 = vmatprep.subr.bf16.mxu0 0
        %1309 = vmatpush1.bf16.msra.mxu0 0
        %1310 = vmatprep.subr.bf16.mxu0 0
        %1311 = vmatpush1.bf16.msra.mxu0 0
        %1312 = vmatprep.subr.bf16.mxu0 0
        %1313 = vmatpush1.bf16.msra.mxu0 0
        %1314 = vmatprep.mubr.bf16.mxu0 0
        %1315 = vmatmul.mubr.bf16.gmra.mrb[0].mxu0 %v1271
        %v1316 = vpop.f32.mrb[0].mxu0
        %v1317 = vadd.f32 %v889, %v1316
        %v1318 = vpop.f32.mrb[0].mxu0
        %v1319 = vadd.f32 %v891, %v1318
        %v1320 = vpop.f32.mrb[0].mxu0
        %v1321 = vadd.f32 %v893, %v1320
        %v1322 = vpop.f32.mrb[0].mxu0
        %v1323 = vadd.f32 %v895, %v1322
        %1324 = vmatprep.mubr.bf16.mxu0 0
        %1325 = vmatmul.mubr.bf16.gmra.mrb[0].mxu0 %v1274
        %v1326 = vpop.f32.mrb[0].mxu0
        %v1327 = vadd.f32 %v899, %v1326
        %v1328 = vpop.f32.mrb[0].mxu0
        %v1329 = vadd.f32 %v901, %v1328
        %v1330 = vpop.f32.mrb[0].mxu0
        %v1331 = vadd.f32 %v903, %v1330
        %v1332 = vpop.f32.mrb[0].mxu0
        %v1333 = vadd.f32 %v905, %v1332
        %1334 = vmatprep.mubr.bf16.mxu0 0
        %1335 = vmatmul.mubr.bf16.gmra.mrb[0].mxu0 %v1277
        %v1336 = vpop.f32.mrb[0].mxu0
        %v1337 = vadd.f32 %v909, %v1336
        %v1338 = vpop.f32.mrb[0].mxu0
        %v1339 = vadd.f32 %v911, %v1338
        %v1340 = vpop.f32.mrb[0].mxu0
        %v1341 = vadd.f32 %v913, %v1340
        %v1342 = vpop.f32.mrb[0].mxu0
        %v1343 = vadd.f32 %v915, %v1342
        %1344 = vmatprep.mubr.bf16.mxu0 0
        %1345 = vmatmul.mubr.bf16.gmra.mrb[0].mxu0 %v1280
        %v1346 = vpop.f32.mrb[0].mxu0
        %v1347 = vadd.f32 %v919, %v1346
        %v1348 = vpop.f32.mrb[0].mxu0
        %v1349 = vadd.f32 %v921, %v1348
        %v1350 = vpop.f32.mrb[0].mxu0
        %v1351 = vadd.f32 %v923, %v1350
        %v1352 = vpop.f32.mrb[0].mxu0
        %v1353 = vadd.f32 %v925, %v1352
        %1354 = vdwg.mxu0
        %1355 = vst [vmem:[%s269 + $0x10] sm:$0xff] %v1317
        %1356 = vst [vmem:[%s269 + $0x18] sm:$0xff] %v1319
        %1357 = vst [vmem:[%s269 + $0x50] sm:$0xff] %v1321
        %1358 = vst [vmem:[%s269 + $0x58] sm:$0xff] %v1323
        %1359 = vst [vmem:[%s269 + $0x90] sm:$0xff] %v1327
        %1360 = vst [vmem:[%s269 + $0x98] sm:$0xff] %v1329
        %1361 = vst [vmem:[%s269 + $0xd0] sm:$0xff] %v1331
        %1362 = vst [vmem:[%s269 + $0xd8] sm:$0xff] %v1333
        %1363 = vst [vmem:[%s269 + $0x110] sm:$0xff] %v1337
        %1364 = vst [vmem:[%s269 + $0x118] sm:$0xff] %v1339
        %1365 = vst [vmem:[%s269 + $0x150] sm:$0xff] %v1341
        %1366 = vst [vmem:[%s269 + $0x158] sm:$0xff] %v1343
        %1367 = vst [vmem:[%s269 + $0x190] sm:$0xff] %v1347
        %1368 = vst [vmem:[%s269 + $0x198] sm:$0xff] %v1349
        %1369 = vst [vmem:[%s269 + $0x1d0] sm:$0xff] %v1351
        %1370 = vst [vmem:[%s269 + $0x1d8] sm:$0xff] %v1353
        %v1371 = vld [vmem:[#allocation2 + $0x20] sm:$0xff]
        %v1372 = vld [vmem:[#allocation2 + $0x28] sm:$0xff]
        %v1373 = vld [vmem:[#allocation2 + $0x60] sm:$0xff]
        %v1374 = vld [vmem:[#allocation2 + $0x68] sm:$0xff]
        %v1375 = vld [vmem:[#allocation2 + $0xa0] sm:$0xff]
        %v1376 = vld [vmem:[#allocation2 + $0xa8] sm:$0xff]
        %v1377 = vld [vmem:[#allocation2 + $0xe0] sm:$0xff]
        %v1378 = vld [vmem:[#allocation2 + $0xe8] sm:$0xff]
        %v1379 = vld [vmem:[%s2] sm:$0xf]
        %v1380 = vld [vmem:[%s2 + $0x4] sm:$0xf]
        %v1381 = vld [vmem:[%s2 + $0x8] sm:$0xf]
        %v1382 = vld [vmem:[%s2 + $0xc] sm:$0xf]
        %v1383 = vpack.c.bf16 %v1373, %v1371
        %v1384 = vpack.c.bf16 %v1374, %v1372
        %v1385 = vpack.c.bf16 %v1377, %v1375
        %v1386 = vpack.c.bf16 %v1378, %v1376
        %v1391 = vunpack.c.l.b16 %v1379
        %v1392 = vunpack.c.l.b16 %v1380
        %v1393 = vunpack.c.l.b16 %v1381
        %v1394 = vunpack.c.l.b16 %v1382
        %v1395 = vpack.c.b16 %v1392, %v1391
        %v1396 = vpack.c.b16 %v1394, %v1393
        %v1398 = vsel %vm742, %v1395, 0
        %v1401 = vsel %vm742, %v1396, 0
        %1403 = vmatprep.subr.bf16.mxu0 %v1384
        %1404 = vmatpush1.bf16.msra.mxu0 %v1383
        %1405 = vmatprep.subr.bf16.mxu0 %v1386
        %1406 = vmatpush1.bf16.msra.mxu0 %v1385
        %1407 = vmatprep.subr.bf16.mxu0 0
        %1408 = vmatpush1.bf16.msra.mxu0 0
        %1409 = vmatprep.subr.bf16.mxu0 0
        %1410 = vmatpush1.bf16.msra.mxu0 0
        %1411 = vmatprep.subr.bf16.mxu0 0
        %1412 = vmatpush1.bf16.msra.mxu0 0
        %1413 = vmatprep.subr.bf16.mxu0 0
        %1414 = vmatpush1.bf16.msra.mxu0 0
        %1415 = vmatprep.subr.bf16.mxu0 0
        %1416 = vmatpush1.bf16.msra.mxu0 0
        %1417 = vmatprep.subr.bf16.mxu0 0
        %1418 = vmatpush1.bf16.msra.mxu0 0
        %1419 = vmatprep.subr.bf16.mxu0 0
        %1420 = vmatpush1.bf16.msra.mxu0 0
        %1421 = vmatprep.subr.bf16.mxu0 0
        %1422 = vmatpush1.bf16.msra.mxu0 0
        %1423 = vmatprep.subr.bf16.mxu0 0
        %1424 = vmatpush1.bf16.msra.mxu0 0
        %1425 = vmatprep.subr.bf16.mxu0 0
        %1426 = vmatpush1.bf16.msra.mxu0 0
        %1427 = vmatprep.subr.bf16.mxu0 0
        %1428 = vmatpush1.bf16.msra.mxu0 0
        %1429 = vmatprep.subr.bf16.mxu0 0
        %1430 = vmatpush1.bf16.msra.mxu0 0
        %1431 = vmatprep.subr.bf16.mxu0 0
        %1432 = vmatpush1.bf16.msra.mxu0 0
        %1433 = vmatprep.subr.bf16.mxu0 0
        %1434 = vmatpush1.bf16.msra.mxu0 0
        %1435 = vmatprep.mubr.bf16.mxu0 0
        %1436 = vmatmul.mubr.bf16.gmra.mrb[0].mxu0 %v1398
        %v1437 = vpop.f32.mrb[0].mxu0
        %v1438 = vadd.f32 %v945, %v1437
        %v1439 = vpop.f32.mrb[0].mxu0
        %v1440 = vadd.f32 %v945, %v1439
        %v1441 = vpop.f32.mrb[0].mxu0
        %v1442 = vadd.f32 %v949, %v1441
        %v1443 = vpop.f32.mrb[0].mxu0
        %v1444 = vadd.f32 %v949, %v1443
        %1445 = vmatprep.mubr.bf16.mxu0 0
        %1446 = vmatmul.mubr.bf16.gmra.mrb[0].mxu0 %v1401
        %v1447 = vpop.f32.mrb[0].mxu0
        %v1448 = vadd.f32 %v953, %v1447
        %v1449 = vpop.f32.mrb[0].mxu0
        %v1450 = vadd.f32 %v953, %v1449
        %v1451 = vpop.f32.mrb[0].mxu0
        %v1452 = vadd.f32 %v957, %v1451
        %v1453 = vpop.f32.mrb[0].mxu0
        %v1454 = vadd.f32 %v957, %v1453
        %1455 = vdwg.mxu0
        %v1456 = vmax.f32 %v1438, 0.0
        %v1457 = vmax.f32 %v1440, 0.0
        %v1458 = vmax.f32 %v1442, 0.0
        %v1459 = vmax.f32 %v1444, 0.0
        %v1460 = vmax.f32 %v1448, 0.0
        %v1461 = vmax.f32 %v1450, 0.0
        %v1462 = vmax.f32 %v1452, 0.0
        %v1463 = vmax.f32 %v1454, 0.0
        %v1464 = vadd.f32 %v1371, %v1456
        %v1465 = vadd.f32 %v1372, %v1457
        %v1466 = vadd.f32 %v1373, %v1458
        %v1467 = vadd.f32 %v1374, %v1459
        %v1468 = vadd.f32 %v1375, %v1460
        %v1469 = vadd.f32 %v1376, %v1461
        %v1470 = vadd.f32 %v1377, %v1462
        %v1471 = vadd.f32 %v1378, %v1463
        %v1472 = vpack.c.bf16 %v1466, %v1464
        %v1473 = vpack.c.bf16 %v1467, %v1465
        %v1474 = vpack.c.bf16 %v1470, %v1468
        %v1475 = vpack.c.bf16 %v1471, %v1469
        %v1476 = vld [vmem:[%s4] sm:$0xf]
        %v1477 = vld [vmem:[%s4 + $0x4] sm:$0xf]
        %v1478 = vld [vmem:[%s4 + $0x8] sm:$0xf]
        %v1479 = vld [vmem:[%s4 + $0xc] sm:$0xf]
        %v1480 = vld [vmem:[%s4 + $0x10] sm:$0xf]
        %v1481 = vld [vmem:[%s4 + $0x14] sm:$0xf]
        %v1482 = vld [vmem:[%s4 + $0x18] sm:$0xf]
        %v1483 = vld [vmem:[%s4 + $0x1c] sm:$0xf]
        %v1492 = vunpack.c.l.b16 %v1476
        %v1493 = vunpack.c.l.b16 %v1477
        %v1494 = vunpack.c.l.b16 %v1478
        %v1495 = vunpack.c.l.b16 %v1479
        %v1496 = vunpack.c.l.b16 %v1480
        %v1497 = vunpack.c.l.b16 %v1481
        %v1498 = vunpack.c.l.b16 %v1482
        %v1499 = vunpack.c.l.b16 %v1483
        %v1500 = vpack.c.b16 %v1493, %v1492
        %v1501 = vpack.c.b16 %v1495, %v1494
        %v1502 = vpack.c.b16 %v1497, %v1496
        %v1503 = vpack.c.b16 %v1499, %v1498
        %v1505 = vsel %vm742, %v1500, 0
        %v1508 = vsel %vm742, %v1501, 0
        %v1511 = vsel %vm742, %v1502, 0
        %v1514 = vsel %vm742, %v1503, 0
        %1516 = vmatprep.subr.bf16.mxu0 %v1473
        %1517 = vmatpush1.bf16.msra.mxu0 %v1472
        %1518 = vmatprep.subr.bf16.mxu0 %v1475
        %1519 = vmatpush1.bf16.msra.mxu0 %v1474
        %1520 = vmatprep.subr.bf16.mxu0 0
        %1521 = vmatpush1.bf16.msra.mxu0 0
        %1522 = vmatprep.subr.bf16.mxu0 0
        %1523 = vmatpush1.bf16.msra.mxu0 0
        %1524 = vmatprep.subr.bf16.mxu0 0
        %1525 = vmatpush1.bf16.msra.mxu0 0
        %1526 = vmatprep.subr.bf16.mxu0 0
        %1527 = vmatpush1.bf16.msra.mxu0 0
        %1528 = vmatprep.subr.bf16.mxu0 0
        %1529 = vmatpush1.bf16.msra.mxu0 0
        %1530 = vmatprep.subr.bf16.mxu0 0
        %1531 = vmatpush1.bf16.msra.mxu0 0
        %1532 = vmatprep.subr.bf16.mxu0 0
        %1533 = vmatpush1.bf16.msra.mxu0 0
        %1534 = vmatprep.subr.bf16.mxu0 0
        %1535 = vmatpush1.bf16.msra.mxu0 0
        %1536 = vmatprep.subr.bf16.mxu0 0
        %1537 = vmatpush1.bf16.msra.mxu0 0
        %1538 = vmatprep.subr.bf16.mxu0 0
        %1539 = vmatpush1.bf16.msra.mxu0 0
        %1540 = vmatprep.subr.bf16.mxu0 0
        %1541 = vmatpush1.bf16.msra.mxu0 0
        %1542 = vmatprep.subr.bf16.mxu0 0
        %1543 = vmatpush1.bf16.msra.mxu0 0
        %1544 = vmatprep.subr.bf16.mxu0 0
        %1545 = vmatpush1.bf16.msra.mxu0 0
        %1546 = vmatprep.subr.bf16.mxu0 0
        %1547 = vmatpush1.bf16.msra.mxu0 0
        %1548 = vmatprep.mubr.bf16.mxu0 0
        %1549 = vmatmul.mubr.bf16.gmra.mrb[0].mxu0 %v1505
        %v1550 = vpop.f32.mrb[0].mxu0
        %v1551 = vadd.f32 %v889, %v1550
        %v1552 = vpop.f32.mrb[0].mxu0
        %v1553 = vadd.f32 %v891, %v1552
        %v1554 = vpop.f32.mrb[0].mxu0
        %v1555 = vadd.f32 %v893, %v1554
        %v1556 = vpop.f32.mrb[0].mxu0
        %v1557 = vadd.f32 %v895, %v1556
        %1558 = vmatprep.mubr.bf16.mxu0 0
        %1559 = vmatmul.mubr.bf16.gmra.mrb[0].mxu0 %v1508
        %v1560 = vpop.f32.mrb[0].mxu0
        %v1561 = vadd.f32 %v899, %v1560
        %v1562 = vpop.f32.mrb[0].mxu0
        %v1563 = vadd.f32 %v901, %v1562
        %v1564 = vpop.f32.mrb[0].mxu0
        %v1565 = vadd.f32 %v903, %v1564
        %v1566 = vpop.f32.mrb[0].mxu0
        %v1567 = vadd.f32 %v905, %v1566
        %1568 = vmatprep.mubr.bf16.mxu0 0
        %1569 = vmatmul.mubr.bf16.gmra.mrb[0].mxu0 %v1511
        %v1570 = vpop.f32.mrb[0].mxu0
        %v1571 = vadd.f32 %v909, %v1570
        %v1572 = vpop.f32.mrb[0].mxu0
        %v1573 = vadd.f32 %v911, %v1572
        %v1574 = vpop.f32.mrb[0].mxu0
        %v1575 = vadd.f32 %v913, %v1574
        %v1576 = vpop.f32.mrb[0].mxu0
        %v1577 = vadd.f32 %v915, %v1576
        %1578 = vmatprep.mubr.bf16.mxu0 0
        %1579 = vmatmul.mubr.bf16.gmra.mrb[0].mxu0 %v1514
        %v1580 = vpop.f32.mrb[0].mxu0
        %v1581 = vadd.f32 %v919, %v1580
        %v1582 = vpop.f32.mrb[0].mxu0
        %v1583 = vadd.f32 %v921, %v1582
        %v1584 = vpop.f32.mrb[0].mxu0
        %v1585 = vadd.f32 %v923, %v1584
        %v1586 = vpop.f32.mrb[0].mxu0
        %v1587 = vadd.f32 %v925, %v1586
        %1588 = vdwg.mxu0
        %1589 = vst [vmem:[%s269 + $0x20] sm:$0xff] %v1551
        %1590 = vst [vmem:[%s269 + $0x28] sm:$0xff] %v1553
        %1591 = vst [vmem:[%s269 + $0x60] sm:$0xff] %v1555
        %1592 = vst [vmem:[%s269 + $0x68] sm:$0xff] %v1557
        %1593 = vst [vmem:[%s269 + $0xa0] sm:$0xff] %v1561
        %1594 = vst [vmem:[%s269 + $0xa8] sm:$0xff] %v1563
        %1595 = vst [vmem:[%s269 + $0xe0] sm:$0xff] %v1565
        %1596 = vst [vmem:[%s269 + $0xe8] sm:$0xff] %v1567
        %1597 = vst [vmem:[%s269 + $0x120] sm:$0xff] %v1571
        %1598 = vst [vmem:[%s269 + $0x128] sm:$0xff] %v1573
        %1599 = vst [vmem:[%s269 + $0x160] sm:$0xff] %v1575
        %1600 = vst [vmem:[%s269 + $0x168] sm:$0xff] %v1577
        %1601 = vst [vmem:[%s269 + $0x1a0] sm:$0xff] %v1581
        %1602 = vst [vmem:[%s269 + $0x1a8] sm:$0xff] %v1583
        %1603 = vst [vmem:[%s269 + $0x1e0] sm:$0xff] %v1585
        %1604 = vst [vmem:[%s269 + $0x1e8] sm:$0xff] %v1587
        %v1605 = vld [vmem:[#allocation2 + $0x30] sm:$0xff]
        %v1606 = vld [vmem:[#allocation2 + $0x38] sm:$0xff]
        %v1607 = vld [vmem:[#allocation2 + $0x70] sm:$0xff]
        %v1608 = vld [vmem:[#allocation2 + $0x78] sm:$0xff]
        %v1609 = vld [vmem:[#allocation2 + $0xb0] sm:$0xff]
        %v1610 = vld [vmem:[#allocation2 + $0xb8] sm:$0xff]
        %v1611 = vld [vmem:[#allocation2 + $0xf0] sm:$0xff]
        %v1612 = vld [vmem:[#allocation2 + $0xf8] sm:$0xff]
        %v1613 = vld [vmem:[%s2] sm:$0xf]
        %v1614 = vld [vmem:[%s2 + $0x4] sm:$0xf]
        %v1615 = vld [vmem:[%s2 + $0x8] sm:$0xf]
        %v1616 = vld [vmem:[%s2 + $0xc] sm:$0xf]
        %v1617 = vpack.c.bf16 %v1607, %v1605
        %v1618 = vpack.c.bf16 %v1608, %v1606
        %v1619 = vpack.c.bf16 %v1611, %v1609
        %v1620 = vpack.c.bf16 %v1612, %v1610
        %v1625 = vunpack.c.l.b16 %v1613
        %v1626 = vunpack.c.l.b16 %v1614
        %v1627 = vunpack.c.l.b16 %v1615
        %v1628 = vunpack.c.l.b16 %v1616
        %v1629 = vpack.c.b16 %v1626, %v1625
        %v1630 = vpack.c.b16 %v1628, %v1627
        %v1632 = vsel %vm742, %v1629, 0
        %v1635 = vsel %vm742, %v1630, 0
        %1637 = vmatprep.subr.bf16.mxu0 %v1618
        %1638 = vmatpush1.bf16.msra.mxu0 %v1617
        %1639 = vmatprep.subr.bf16.mxu0 %v1620
        %1640 = vmatpush1.bf16.msra.mxu0 %v1619
        %1641 = vmatprep.subr.bf16.mxu0 0
        %1642 = vmatpush1.bf16.msra.mxu0 0
        %1643 = vmatprep.subr.bf16.mxu0 0
        %1644 = vmatpush1.bf16.msra.mxu0 0
        %1645 = vmatprep.subr.bf16.mxu0 0
        %1646 = vmatpush1.bf16.msra.mxu0 0
        %1647 = vmatprep.subr.bf16.mxu0 0
        %1648 = vmatpush1.bf16.msra.mxu0 0
        %1649 = vmatprep.subr.bf16.mxu0 0
        %1650 = vmatpush1.bf16.msra.mxu0 0
        %1651 = vmatprep.subr.bf16.mxu0 0
        %1652 = vmatpush1.bf16.msra.mxu0 0
        %1653 = vmatprep.subr.bf16.mxu0 0
        %1654 = vmatpush1.bf16.msra.mxu0 0
        %1655 = vmatprep.subr.bf16.mxu0 0
        %1656 = vmatpush1.bf16.msra.mxu0 0
        %1657 = vmatprep.subr.bf16.mxu0 0
        %1658 = vmatpush1.bf16.msra.mxu0 0
        %1659 = vmatprep.subr.bf16.mxu0 0
        %1660 = vmatpush1.bf16.msra.mxu0 0
        %1661 = vmatprep.subr.bf16.mxu0 0
        %1662 = vmatpush1.bf16.msra.mxu0 0
        %1663 = vmatprep.subr.bf16.mxu0 0
        %1664 = vmatpush1.bf16.msra.mxu0 0
        %1665 = vmatprep.subr.bf16.mxu0 0
        %1666 = vmatpush1.bf16.msra.mxu0 0
        %1667 = vmatprep.subr.bf16.mxu0 0
        %1668 = vmatpush1.bf16.msra.mxu0 0
        %1669 = vmatprep.mubr.bf16.mxu0 0
        %1670 = vmatmul.mubr.bf16.gmra.mrb[0].mxu0 %v1632
        %v1671 = vpop.f32.mrb[0].mxu0
        %v1672 = vadd.f32 %v945, %v1671
        %v1673 = vpop.f32.mrb[0].mxu0
        %v1674 = vadd.f32 %v945, %v1673
        %v1675 = vpop.f32.mrb[0].mxu0
        %v1676 = vadd.f32 %v949, %v1675
        %v1677 = vpop.f32.mrb[0].mxu0
        %v1678 = vadd.f32 %v949, %v1677
        %1679 = vmatprep.mubr.bf16.mxu0 0
        %1680 = vmatmul.mubr.bf16.gmra.mrb[0].mxu0 %v1635
        %v1681 = vpop.f32.mrb[0].mxu0
        %v1682 = vadd.f32 %v953, %v1681
        %v1683 = vpop.f32.mrb[0].mxu0
        %v1684 = vadd.f32 %v953, %v1683
        %v1685 = vpop.f32.mrb[0].mxu0
        %v1686 = vadd.f32 %v957, %v1685
        %v1687 = vpop.f32.mrb[0].mxu0
        %v1688 = vadd.f32 %v957, %v1687
        %1689 = vdwg.mxu0
        %v1690 = vmax.f32 %v1672, 0.0
        %v1691 = vmax.f32 %v1674, 0.0
        %v1692 = vmax.f32 %v1676, 0.0
        %v1693 = vmax.f32 %v1678, 0.0
        %v1694 = vmax.f32 %v1682, 0.0
        %v1695 = vmax.f32 %v1684, 0.0
        %v1696 = vmax.f32 %v1686, 0.0
        %v1697 = vmax.f32 %v1688, 0.0
        %v1698 = vadd.f32 %v1605, %v1690
        %v1699 = vadd.f32 %v1606, %v1691
        %v1700 = vadd.f32 %v1607, %v1692
        %v1701 = vadd.f32 %v1608, %v1693
        %v1702 = vadd.f32 %v1609, %v1694
        %v1703 = vadd.f32 %v1610, %v1695
        %v1704 = vadd.f32 %v1611, %v1696
        %v1705 = vadd.f32 %v1612, %v1697
        %v1706 = vpack.c.bf16 %v1700, %v1698
        %v1707 = vpack.c.bf16 %v1701, %v1699
        %v1708 = vpack.c.bf16 %v1704, %v1702
        %v1709 = vpack.c.bf16 %v1705, %v1703
        %v1710 = vld [vmem:[%s4] sm:$0xf]
        %v1711 = vld [vmem:[%s4 + $0x4] sm:$0xf]
        %v1712 = vld [vmem:[%s4 + $0x8] sm:$0xf]
        %v1713 = vld [vmem:[%s4 + $0xc] sm:$0xf]
        %v1714 = vld [vmem:[%s4 + $0x10] sm:$0xf]
        %v1715 = vld [vmem:[%s4 + $0x14] sm:$0xf]
        %v1716 = vld [vmem:[%s4 + $0x18] sm:$0xf]
        %v1717 = vld [vmem:[%s4 + $0x1c] sm:$0xf]
        %v1726 = vunpack.c.l.b16 %v1710
        %v1727 = vunpack.c.l.b16 %v1711
        %v1728 = vunpack.c.l.b16 %v1712
        %v1729 = vunpack.c.l.b16 %v1713
        %v1730 = vunpack.c.l.b16 %v1714
        %v1731 = vunpack.c.l.b16 %v1715
        %v1732 = vunpack.c.l.b16 %v1716
        %v1733 = vunpack.c.l.b16 %v1717
        %v1734 = vpack.c.b16 %v1727, %v1726
        %v1735 = vpack.c.b16 %v1729, %v1728
        %v1736 = vpack.c.b16 %v1731, %v1730
        %v1737 = vpack.c.b16 %v1733, %v1732
        %v1739 = vsel %vm742, %v1734, 0
        %v1742 = vsel %vm742, %v1735, 0
        %v1745 = vsel %vm742, %v1736, 0
        %v1748 = vsel %vm742, %v1737, 0
        %1750 = vmatprep.subr.bf16.mxu0 %v1707
        %1751 = vmatpush1.bf16.msra.mxu0 %v1706
        %1752 = vmatprep.subr.bf16.mxu0 %v1709
        %1753 = vmatpush1.bf16.msra.mxu0 %v1708
        %1754 = vmatprep.subr.bf16.mxu0 0
        %1755 = vmatpush1.bf16.msra.mxu0 0
        %1756 = vmatprep.subr.bf16.mxu0 0
        %1757 = vmatpush1.bf16.msra.mxu0 0
        %1758 = vmatprep.subr.bf16.mxu0 0
        %1759 = vmatpush1.bf16.msra.mxu0 0
        %1760 = vmatprep.subr.bf16.mxu0 0
        %1761 = vmatpush1.bf16.msra.mxu0 0
        %1762 = vmatprep.subr.bf16.mxu0 0
        %1763 = vmatpush1.bf16.msra.mxu0 0
        %1764 = vmatprep.subr.bf16.mxu0 0
        %1765 = vmatpush1.bf16.msra.mxu0 0
        %1766 = vmatprep.subr.bf16.mxu0 0
        %1767 = vmatpush1.bf16.msra.mxu0 0
        %1768 = vmatprep.subr.bf16.mxu0 0
        %1769 = vmatpush1.bf16.msra.mxu0 0
        %1770 = vmatprep.subr.bf16.mxu0 0
        %1771 = vmatpush1.bf16.msra.mxu0 0
        %1772 = vmatprep.subr.bf16.mxu0 0
        %1773 = vmatpush1.bf16.msra.mxu0 0
        %1774 = vmatprep.subr.bf16.mxu0 0
        %1775 = vmatpush1.bf16.msra.mxu0 0
        %1776 = vmatprep.subr.bf16.mxu0 0
        %1777 = vmatpush1.bf16.msra.mxu0 0
        %1778 = vmatprep.subr.bf16.mxu0 0
        %1779 = vmatpush1.bf16.msra.mxu0 0
        %1780 = vmatprep.subr.bf16.mxu0 0
        %1781 = vmatpush1.bf16.msra.mxu0 0
        %1782 = vmatprep.mubr.bf16.mxu0 0
        %1783 = vmatmul.mubr.bf16.gmra.mrb[0].mxu0 %v1739
        %v1784 = vpop.f32.mrb[0].mxu0
        %v1785 = vadd.f32 %v889, %v1784
        %v1786 = vpop.f32.mrb[0].mxu0
        %v1787 = vadd.f32 %v891, %v1786
        %v1788 = vpop.f32.mrb[0].mxu0
        %v1789 = vadd.f32 %v893, %v1788
        %v1790 = vpop.f32.mrb[0].mxu0
        %v1791 = vadd.f32 %v895, %v1790
        %1792 = vmatprep.mubr.bf16.mxu0 0
        %1793 = vmatmul.mubr.bf16.gmra.mrb[0].mxu0 %v1742
        %v1794 = vpop.f32.mrb[0].mxu0
        %v1795 = vadd.f32 %v899, %v1794
        %v1796 = vpop.f32.mrb[0].mxu0
        %v1797 = vadd.f32 %v901, %v1796
        %v1798 = vpop.f32.mrb[0].mxu0
        %v1799 = vadd.f32 %v903, %v1798
        %v1800 = vpop.f32.mrb[0].mxu0
        %v1801 = vadd.f32 %v905, %v1800
        %1802 = vmatprep.mubr.bf16.mxu0 0
        %1803 = vmatmul.mubr.bf16.gmra.mrb[0].mxu0 %v1745
        %v1804 = vpop.f32.mrb[0].mxu0
        %v1805 = vadd.f32 %v909, %v1804
        %v1806 = vpop.f32.mrb[0].mxu0
        %v1807 = vadd.f32 %v911, %v1806
        %v1808 = vpop.f32.mrb[0].mxu0
        %v1809 = vadd.f32 %v913, %v1808
        %v1810 = vpop.f32.mrb[0].mxu0
        %v1811 = vadd.f32 %v915, %v1810
        %1812 = vmatprep.mubr.bf16.mxu0 0
        %1813 = vmatmul.mubr.bf16.gmra.mrb[0].mxu0 %v1748
        %v1814 = vpop.f32.mrb[0].mxu0
        %v1815 = vadd.f32 %v919, %v1814
        %v1816 = vpop.f32.mrb[0].mxu0
        %v1817 = vadd.f32 %v921, %v1816
        %v1818 = vpop.f32.mrb[0].mxu0
        %v1819 = vadd.f32 %v923, %v1818
        %v1820 = vpop.f32.mrb[0].mxu0
        %v1821 = vadd.f32 %v925, %v1820
        %1822 = vdwg.mxu0
        %1823 = vst [vmem:[%s269 + $0x30] sm:$0xff] %v1785
        %1824 = vst [vmem:[%s269 + $0x38] sm:$0xff] %v1787
        %1825 = vst [vmem:[%s269 + $0x70] sm:$0xff] %v1789
        %1826 = vst [vmem:[%s269 + $0x78] sm:$0xff] %v1791
        %1827 = vst [vmem:[%s269 + $0xb0] sm:$0xff] %v1795
        %1828 = vst [vmem:[%s269 + $0xb8] sm:$0xff] %v1797
        %1829 = vst [vmem:[%s269 + $0xf0] sm:$0xff] %v1799
        %1830 = vst [vmem:[%s269 + $0xf8] sm:$0xff] %v1801
        %1831 = vst [vmem:[%s269 + $0x130] sm:$0xff] %v1805
        %1832 = vst [vmem:[%s269 + $0x138] sm:$0xff] %v1807
        %1833 = vst [vmem:[%s269 + $0x170] sm:$0xff] %v1809
        %1834 = vst [vmem:[%s269 + $0x178] sm:$0xff] %v1811
        %1835 = vst [vmem:[%s269 + $0x1b0] sm:$0xff] %v1815
        %1836 = vst [vmem:[%s269 + $0x1b8] sm:$0xff] %v1817
        %1837 = vst [vmem:[%s269 + $0x1f0] sm:$0xff] %v1819
        %1838 = vst [vmem:[%s269 + $0x1f8] sm:$0xff] %v1821
        %s1839 = sand.u32 %s162, 1
        %s1840 = scalar_lea.sflag [#allocation5], %s1839
        %s1841 = sand.u32 %s162, 1
        %s1842 = smul.addr %s1841, 512
        %s1843 = scalar_lea.vmem [#allocation6], %s1842
        // Predicated region
        $region49: #{tpu_custom_call.1} parent=43 // pred_check
          %p1844 = pneg %p172
        $region50: #{tpu_custom_call.1} parent=43 // pred_check_branch
          %1846 = sbr.rel (%p1844) target = $region52
        $region51: #{tpu_custom_call.1} parent=43 // pred_region
          %s1848 = ssub.s32 8192, 8192
          %1849 = vsyncadd %s1840, %s1848
          %s1850 = smul.addr %s23, 64
          %s1851 = smul.addr %s1850, 128
          %s1852 = scalar_lea.hbm %s6, %s1851
          %s1853 = sshll.u32 %s1843, 4
          %s1854 = int_to_ptr.vmem [resolvable:$true] %s1853
          %1859 = dma.vmem_to_hbm [thread:$0]  %s1854, 8192, %s1852, %s1840, 1024, 1024, 64
        $region52: #{tpu_custom_call.1} parent=43 // pred_fallthru
          _
      $region44: #{tpu_custom_call.1} parent=5 // pred_fallthru
        _
      %p1860 = scmp.le.s32.totalorder 2, %s18
      // Predicated region
      $region53: #{tpu_custom_call.1} parent=5 // pred_check
        %p1861 = pneg %p1860
      $region54: #{tpu_custom_call.1} parent=5 // pred_check_branch
        %1863 = sbr.rel (%p1861) target = $region56
      $region55: #{tpu_custom_call.1} parent=5 // pred_region
        %s1864 = ssub.s32 %s18, 2
        // Predicated region
        $region57: #{tpu_custom_call.1} parent=55 // pred_check
          %p1865 = pneg %p178
        $region58: #{tpu_custom_call.1} parent=55 // pred_check_branch
          %1867 = sbr.rel (%p1865) target = $region60
        $region59: #{tpu_custom_call.1} parent=55 // pred_region
          %s1868 = sand.u32 %s163, 1
          %s1869 = scalar_lea.sflag [#allocation5], %s1868
          %s1870 = sand.u32 %s163, 1
          %s1871 = smul.addr %s1870, 512
          %s1872 = scalar_lea.vmem [#allocation6], %s1871
          %1873 = dma.done %s1869, 8192
        $region60: #{tpu_custom_call.1} parent=55 // pred_fallthru
          _
      $region56: #{tpu_custom_call.1} parent=5 // pred_fallthru
        _
    $region6: #{tpu_custom_call.1} parent=1 // loop_footer
      %s22 = sadd.s32 1, %s18
    $region7: #{tpu_custom_call.1} parent=1 // loop_footer_branch
      %17 = sbr.rel target = $region3
    $region8: #{tpu_custom_call.1} parent=1 // loop_exit
      _
    %1874 = vsyncpa [#allocation4], 1
    %s1875 = scalar_lea.sflag [#allocation4], 1
    %1876 = vsyncpa %s1875, 1
    %1877 = vsyncpa [#allocation5], 1
    %s1878 = scalar_lea.sflag [#allocation5], 1
    %1879 = vsyncpa %s1878, 1

</llo_original>
